<compile_context>
chip_gen: v5e
topology: v5e:2x2
jax: 0.10.0
libtpu: 0.0.40
codegen_flags: <defaults>
</compile_context>

<pallas_src>
import functools

import jax
import jax.numpy as jnp
import numpy as np
from jax.experimental import pallas as pl
from jax.experimental.pallas import tpu as pltpu

NUM_CLASSES = 40            # module: torch.zeros(40)
FEAT = 3648                 # module: torch.zeros(40, 3648)
LANE = 128
F_PAD = ((FEAT + LANE - 1) // LANE) * LANE    # 3648 -> 3712
NB = F_PAD // LANE                            # 29 lane tiles per class row


def _center_count_kernel(las_ref,       # (B,)            int32  SMEM : labels
                         add_ref,       # (B, NB, 128)    f32    VMEM : add_fts rows
                         fts_in_hbm,    # (C, NB, 128)    f32    HBM  : aliased input (unused; same buffer as fts_hbm)
                         nums_in_ref,   # (C,)            f32    SMEM : initial counts
                         fts_hbm,       # (C, NB, 128)    f32    HBM  : aliased output state
                         nums_ref,      # (C,)            f32    SMEM : output counts
                         row_buf,       # (NB, 128)       f32    VMEM scratch (one class row)
                         sem):          # (2,) DMA semaphores
    C = nums_ref.shape[0]
    B = add_ref.shape[0]

    # Copy persistent counts into the output ref (tiny scalar copy, unrolled).
    def init_nums(c, carry):
        nums_ref[c] = nums_in_ref[c]
        return carry

    jax.lax.fori_loop(0, C, init_nums, 0, unroll=True)

    # Sequential running-mean update: fetch only the touched class row from
    # HBM, update it in VMEM, and write it straight back.  The wait on the
    # store DMA orders read-after-write for repeated labels.
    def body(b, carry):
        las = las_ref[b]                       # dynamic scalar label
        n = nums_ref[las]                      # current count (scalar, SMEM)
        inv = 1.0 / (n + 1.0)                  # scalar reciprocal (no vector divide)

        ld = pltpu.make_async_copy(fts_hbm.at[las], row_buf, sem.at[0])
        ld.start()
        ld.wait()

        # n*row/(n+1) + add/(n+1)  ==  (n*row + add) * inv
        row_buf[...] = (n * row_buf[...] + add_ref[b]) * inv

        st = pltpu.make_async_copy(row_buf, fts_hbm.at[las], sem.at[1])
        st.start()
        st.wait()

        nums_ref[las] = n + 1.0
        return carry

    jax.lax.fori_loop(0, B, body, 0, unroll=True)


def init_state():
    """Persistent module state in the padded on-device layout."""
    return (jnp.zeros((NUM_CLASSES, NB, LANE), dtype=jnp.float32),
            jnp.zeros((NUM_CLASSES,), dtype=jnp.float32))


def state_to_fts(fts_state):
    """View the padded state as the (40, 3648) fts the module returns."""
    return fts_state.reshape(NUM_CLASSES, F_PAD)[:, :FEAT]


@functools.partial(jax.jit, donate_argnums=(2,))
def center_count_step(add_fts, add_las, fts_state, nums_state):
    """One forward() call. Returns the updated (fts_state, nums_state)."""
    B, F = add_fts.shape
    pad = F_PAD - F
    add_3d = jnp.pad(add_fts.astype(jnp.float32),
                     ((0, 0), (0, pad))).reshape(B, NB, LANE)

    fts_out, nums_out = pl.pallas_call(
        _center_count_kernel,
        out_shape=[
            jax.ShapeDtypeStruct((NUM_CLASSES, NB, LANE), jnp.float32),
            jax.ShapeDtypeStruct((NUM_CLASSES,), jnp.float32),
        ],
        in_specs=[
            pl.BlockSpec(memory_space=pltpu.MemorySpace.SMEM),   # add_las
            pl.BlockSpec(memory_space=pltpu.MemorySpace.VMEM),   # add_fts rows
            pl.BlockSpec(memory_space=pl.ANY),                   # fts state (HBM)
            pl.BlockSpec(memory_space=pltpu.MemorySpace.SMEM),   # nums
        ],
        out_specs=[
            pl.BlockSpec(memory_space=pl.ANY),                   # fts state out (aliased)
            pl.BlockSpec(memory_space=pltpu.MemorySpace.SMEM),   # nums out
        ],
        scratch_shapes=[
            pltpu.VMEM((NB, LANE), jnp.float32),                 # one class row
            pltpu.SemaphoreType.DMA((2,)),                       # load / store sems
        ],
        input_output_aliases={2: 0},    # fts state updated in place (HBM buffer)
    )(add_las.astype(jnp.int32), add_3d, fts_state,
      nums_state.astype(jnp.float32))

    return fts_out, nums_out


def _reference(add_fts, add_las, fts, nums):
    fts = np.array(fts, dtype=np.float64).copy()
    nums = np.array(nums, dtype=np.float64).copy()
    add_fts = np.array(add_fts, dtype=np.float64)
    for idx in range(add_las.shape[0]):
        las = int(add_las[idx])
        fts[las] = nums[las] * fts[las] / (nums[las] + 1) + add_fts[idx] / (nums[las] + 1)
        nums[las] += 1
    return fts, nums


if __name__ == "__main__":
    key = jax.random.PRNGKey(0)
    k1, k2, k3, k4 = jax.random.split(key, 4)

    B = 8
    # Two batches; labels drawn from small ranges so repeated labels exercise
    # the sequential running-mean dependency both within and across calls.
    add_fts1 = jax.random.normal(k1, (B, FEAT), dtype=jnp.float32)
    add_las1 = jax.random.randint(k2, (B,), 0, 5, dtype=jnp.int32)
    add_fts2 = jax.random.normal(k3, (B, FEAT), dtype=jnp.float32)
    add_las2 = jax.random.randint(k4, (B,), 0, 8, dtype=jnp.int32)

    # Host-side float64 reference (iterative, matches the PyTorch loop).
    ref_fts = np.zeros((NUM_CLASSES, FEAT), dtype=np.float64)
    ref_nums = np.zeros((NUM_CLASSES,), dtype=np.float64)
    ref_fts, ref_nums = _reference(np.asarray(add_fts1), np.asarray(add_las1),
                                   ref_fts, ref_nums)
    ref_fts, ref_nums = _reference(np.asarray(add_fts2), np.asarray(add_las2),
                                   ref_fts, ref_nums)

    # Device: two forward() calls with persistent state threaded through.
    fts_state, nums_state = init_state()
    fts_state, nums_state = center_count_step(add_fts1, add_las1,
                                              fts_state, nums_state)
    fts_state, nums_state = center_count_step(add_fts2, add_las2,
                                              fts_state, nums_state)

    fts_out = jax.block_until_ready(state_to_fts(fts_state))
    nums_out = jax.block_until_ready(nums_state)

    np.testing.assert_allclose(np.asarray(fts_out), ref_fts, rtol=1e-5, atol=1e-5)
    np.testing.assert_allclose(np.asarray(nums_out), ref_nums, rtol=0, atol=0)

    print("KERNEL_OK")
</pallas_src>

<mosaic_0001>
module attributes {stable_mosaic.version = 11 : i64} {
  func.func @_center_count_kernel(%arg0: memref<8xi32, #tpu.memory_space<smem>>, %arg1: memref<8x29x128xf32, #tpu.memory_space<vmem>>, %arg2: memref<40x29x128xf32, #tpu.memory_space<any>>, %arg3: memref<40xf32, #tpu.memory_space<smem>>, %arg4: memref<40x29x128xf32, #tpu.memory_space<any>>, %arg5: memref<40xf32, #tpu.memory_space<smem>>, %arg6: memref<29x128xf32, #tpu.memory_space<vmem>>, %arg7: memref<2x!tpu.dma_semaphore, #tpu.memory_space<semaphore_mem>>) attributes {dimension_semantics = [], scalar_prefetch = 0 : i64, scratch_operands = 2 : i64, tpu.core_type = #tpu.core_type<tc>} {
    %c0_i32 = arith.constant 0 : i32
    %0 = arith.index_cast %c0_i32 : i32 to index
    %1 = memref.load %arg3[%0] : memref<40xf32, #tpu.memory_space<smem>>
    %2 = arith.index_cast %c0_i32 : i32 to index
    %3 = memref.load %arg5[%2] : memref<40xf32, #tpu.memory_space<smem>>
    memref.store %1, %arg5[%2] : memref<40xf32, #tpu.memory_space<smem>>
    %c1_i32 = arith.constant 1 : i32
    %4 = arith.index_cast %c1_i32 : i32 to index
    %5 = memref.load %arg3[%4] : memref<40xf32, #tpu.memory_space<smem>>
    %6 = arith.index_cast %c1_i32 : i32 to index
    %7 = memref.load %arg5[%6] : memref<40xf32, #tpu.memory_space<smem>>
    memref.store %5, %arg5[%6] : memref<40xf32, #tpu.memory_space<smem>>
    %c2_i32 = arith.constant 2 : i32
    %8 = arith.index_cast %c2_i32 : i32 to index
    %9 = memref.load %arg3[%8] : memref<40xf32, #tpu.memory_space<smem>>
    %10 = arith.index_cast %c2_i32 : i32 to index
    %11 = memref.load %arg5[%10] : memref<40xf32, #tpu.memory_space<smem>>
    memref.store %9, %arg5[%10] : memref<40xf32, #tpu.memory_space<smem>>
    %c3_i32 = arith.constant 3 : i32
    %12 = arith.index_cast %c3_i32 : i32 to index
    %13 = memref.load %arg3[%12] : memref<40xf32, #tpu.memory_space<smem>>
    %14 = arith.index_cast %c3_i32 : i32 to index
    %15 = memref.load %arg5[%14] : memref<40xf32, #tpu.memory_space<smem>>
    memref.store %13, %arg5[%14] : memref<40xf32, #tpu.memory_space<smem>>
    %c4_i32 = arith.constant 4 : i32
    %16 = arith.index_cast %c4_i32 : i32 to index
    %17 = memref.load %arg3[%16] : memref<40xf32, #tpu.memory_space<smem>>
    %18 = arith.index_cast %c4_i32 : i32 to index
    %19 = memref.load %arg5[%18] : memref<40xf32, #tpu.memory_space<smem>>
    memref.store %17, %arg5[%18] : memref<40xf32, #tpu.memory_space<smem>>
    %c5_i32 = arith.constant 5 : i32
    %20 = arith.index_cast %c5_i32 : i32 to index
    %21 = memref.load %arg3[%20] : memref<40xf32, #tpu.memory_space<smem>>
    %22 = arith.index_cast %c5_i32 : i32 to index
    %23 = memref.load %arg5[%22] : memref<40xf32, #tpu.memory_space<smem>>
    memref.store %21, %arg5[%22] : memref<40xf32, #tpu.memory_space<smem>>
    %c6_i32 = arith.constant 6 : i32
    %24 = arith.index_cast %c6_i32 : i32 to index
    %25 = memref.load %arg3[%24] : memref<40xf32, #tpu.memory_space<smem>>
    %26 = arith.index_cast %c6_i32 : i32 to index
    %27 = memref.load %arg5[%26] : memref<40xf32, #tpu.memory_space<smem>>
    memref.store %25, %arg5[%26] : memref<40xf32, #tpu.memory_space<smem>>
    %c7_i32 = arith.constant 7 : i32
    %28 = arith.index_cast %c7_i32 : i32 to index
    %29 = memref.load %arg3[%28] : memref<40xf32, #tpu.memory_space<smem>>
    %30 = arith.index_cast %c7_i32 : i32 to index
    %31 = memref.load %arg5[%30] : memref<40xf32, #tpu.memory_space<smem>>
    memref.store %29, %arg5[%30] : memref<40xf32, #tpu.memory_space<smem>>
    %c8_i32 = arith.constant 8 : i32
    %32 = arith.index_cast %c8_i32 : i32 to index
    %33 = memref.load %arg3[%32] : memref<40xf32, #tpu.memory_space<smem>>
    %34 = arith.index_cast %c8_i32 : i32 to index
    %35 = memref.load %arg5[%34] : memref<40xf32, #tpu.memory_space<smem>>
    memref.store %33, %arg5[%34] : memref<40xf32, #tpu.memory_space<smem>>
    %c9_i32 = arith.constant 9 : i32
    %36 = arith.index_cast %c9_i32 : i32 to index
    %37 = memref.load %arg3[%36] : memref<40xf32, #tpu.memory_space<smem>>
    %38 = arith.index_cast %c9_i32 : i32 to index
    %39 = memref.load %arg5[%38] : memref<40xf32, #tpu.memory_space<smem>>
    memref.store %37, %arg5[%38] : memref<40xf32, #tpu.memory_space<smem>>
    %c10_i32 = arith.constant 10 : i32
    %40 = arith.index_cast %c10_i32 : i32 to index
    %41 = memref.load %arg3[%40] : memref<40xf32, #tpu.memory_space<smem>>
    %42 = arith.index_cast %c10_i32 : i32 to index
    %43 = memref.load %arg5[%42] : memref<40xf32, #tpu.memory_space<smem>>
    memref.store %41, %arg5[%42] : memref<40xf32, #tpu.memory_space<smem>>
    %c11_i32 = arith.constant 11 : i32
    %44 = arith.index_cast %c11_i32 : i32 to index
    %45 = memref.load %arg3[%44] : memref<40xf32, #tpu.memory_space<smem>>
    %46 = arith.index_cast %c11_i32 : i32 to index
    %47 = memref.load %arg5[%46] : memref<40xf32, #tpu.memory_space<smem>>
    memref.store %45, %arg5[%46] : memref<40xf32, #tpu.memory_space<smem>>
    %c12_i32 = arith.constant 12 : i32
    %48 = arith.index_cast %c12_i32 : i32 to index
    %49 = memref.load %arg3[%48] : memref<40xf32, #tpu.memory_space<smem>>
    %50 = arith.index_cast %c12_i32 : i32 to index
    %51 = memref.load %arg5[%50] : memref<40xf32, #tpu.memory_space<smem>>
    memref.store %49, %arg5[%50] : memref<40xf32, #tpu.memory_space<smem>>
    %c13_i32 = arith.constant 13 : i32
    %52 = arith.index_cast %c13_i32 : i32 to index
    %53 = memref.load %arg3[%52] : memref<40xf32, #tpu.memory_space<smem>>
    %54 = arith.index_cast %c13_i32 : i32 to index
    %55 = memref.load %arg5[%54] : memref<40xf32, #tpu.memory_space<smem>>
    memref.store %53, %arg5[%54] : memref<40xf32, #tpu.memory_space<smem>>
    %c14_i32 = arith.constant 14 : i32
    %56 = arith.index_cast %c14_i32 : i32 to index
    %57 = memref.load %arg3[%56] : memref<40xf32, #tpu.memory_space<smem>>
    %58 = arith.index_cast %c14_i32 : i32 to index
    %59 = memref.load %arg5[%58] : memref<40xf32, #tpu.memory_space<smem>>
    memref.store %57, %arg5[%58] : memref<40xf32, #tpu.memory_space<smem>>
    %c15_i32 = arith.constant 15 : i32
    %60 = arith.index_cast %c15_i32 : i32 to index
    %61 = memref.load %arg3[%60] : memref<40xf32, #tpu.memory_space<smem>>
    %62 = arith.index_cast %c15_i32 : i32 to index
    %63 = memref.load %arg5[%62] : memref<40xf32, #tpu.memory_space<smem>>
    memref.store %61, %arg5[%62] : memref<40xf32, #tpu.memory_space<smem>>
    %c16_i32 = arith.constant 16 : i32
    %64 = arith.index_cast %c16_i32 : i32 to index
    %65 = memref.load %arg3[%64] : memref<40xf32, #tpu.memory_space<smem>>
    %66 = arith.index_cast %c16_i32 : i32 to index
    %67 = memref.load %arg5[%66] : memref<40xf32, #tpu.memory_space<smem>>
    memref.store %65, %arg5[%66] : memref<40xf32, #tpu.memory_space<smem>>
    %c17_i32 = arith.constant 17 : i32
    %68 = arith.index_cast %c17_i32 : i32 to index
    %69 = memref.load %arg3[%68] : memref<40xf32, #tpu.memory_space<smem>>
    %70 = arith.index_cast %c17_i32 : i32 to index
    %71 = memref.load %arg5[%70] : memref<40xf32, #tpu.memory_space<smem>>
    memref.store %69, %arg5[%70] : memref<40xf32, #tpu.memory_space<smem>>
    %c18_i32 = arith.constant 18 : i32
    %72 = arith.index_cast %c18_i32 : i32 to index
    %73 = memref.load %arg3[%72] : memref<40xf32, #tpu.memory_space<smem>>
    %74 = arith.index_cast %c18_i32 : i32 to index
    %75 = memref.load %arg5[%74] : memref<40xf32, #tpu.memory_space<smem>>
    memref.store %73, %arg5[%74] : memref<40xf32, #tpu.memory_space<smem>>
    %c19_i32 = arith.constant 19 : i32
    %76 = arith.index_cast %c19_i32 : i32 to index
    %77 = memref.load %arg3[%76] : memref<40xf32, #tpu.memory_space<smem>>
    %78 = arith.index_cast %c19_i32 : i32 to index
    %79 = memref.load %arg5[%78] : memref<40xf32, #tpu.memory_space<smem>>
    memref.store %77, %arg5[%78] : memref<40xf32, #tpu.memory_space<smem>>
    %c20_i32 = arith.constant 20 : i32
    %80 = arith.index_cast %c20_i32 : i32 to index
    %81 = memref.load %arg3[%80] : memref<40xf32, #tpu.memory_space<smem>>
    %82 = arith.index_cast %c20_i32 : i32 to index
    %83 = memref.load %arg5[%82] : memref<40xf32, #tpu.memory_space<smem>>
    memref.store %81, %arg5[%82] : memref<40xf32, #tpu.memory_space<smem>>
    %c21_i32 = arith.constant 21 : i32
    %84 = arith.index_cast %c21_i32 : i32 to index
    %85 = memref.load %arg3[%84] : memref<40xf32, #tpu.memory_space<smem>>
    %86 = arith.index_cast %c21_i32 : i32 to index
    %87 = memref.load %arg5[%86] : memref<40xf32, #tpu.memory_space<smem>>
    memref.store %85, %arg5[%86] : memref<40xf32, #tpu.memory_space<smem>>
    %c22_i32 = arith.constant 22 : i32
    %88 = arith.index_cast %c22_i32 : i32 to index
    %89 = memref.load %arg3[%88] : memref<40xf32, #tpu.memory_space<smem>>
    %90 = arith.index_cast %c22_i32 : i32 to index
    %91 = memref.load %arg5[%90] : memref<40xf32, #tpu.memory_space<smem>>
    memref.store %89, %arg5[%90] : memref<40xf32, #tpu.memory_space<smem>>
    %c23_i32 = arith.constant 23 : i32
    %92 = arith.index_cast %c23_i32 : i32 to index
    %93 = memref.load %arg3[%92] : memref<40xf32, #tpu.memory_space<smem>>
    %94 = arith.index_cast %c23_i32 : i32 to index
    %95 = memref.load %arg5[%94] : memref<40xf32, #tpu.memory_space<smem>>
    memref.store %93, %arg5[%94] : memref<40xf32, #tpu.memory_space<smem>>
    %c24_i32 = arith.constant 24 : i32
    %96 = arith.index_cast %c24_i32 : i32 to index
    %97 = memref.load %arg3[%96] : memref<40xf32, #tpu.memory_space<smem>>
    %98 = arith.index_cast %c24_i32 : i32 to index
    %99 = memref.load %arg5[%98] : memref<40xf32, #tpu.memory_space<smem>>
    memref.store %97, %arg5[%98] : memref<40xf32, #tpu.memory_space<smem>>
    %c25_i32 = arith.constant 25 : i32
    %100 = arith.index_cast %c25_i32 : i32 to index
    %101 = memref.load %arg3[%100] : memref<40xf32, #tpu.memory_space<smem>>
    %102 = arith.index_cast %c25_i32 : i32 to index
    %103 = memref.load %arg5[%102] : memref<40xf32, #tpu.memory_space<smem>>
    memref.store %101, %arg5[%102] : memref<40xf32, #tpu.memory_space<smem>>
    %c26_i32 = arith.constant 26 : i32
    %104 = arith.index_cast %c26_i32 : i32 to index
    %105 = memref.load %arg3[%104] : memref<40xf32, #tpu.memory_space<smem>>
    %106 = arith.index_cast %c26_i32 : i32 to index
    %107 = memref.load %arg5[%106] : memref<40xf32, #tpu.memory_space<smem>>
    memref.store %105, %arg5[%106] : memref<40xf32, #tpu.memory_space<smem>>
    %c27_i32 = arith.constant 27 : i32
    %108 = arith.index_cast %c27_i32 : i32 to index
    %109 = memref.load %arg3[%108] : memref<40xf32, #tpu.memory_space<smem>>
    %110 = arith.index_cast %c27_i32 : i32 to index
    %111 = memref.load %arg5[%110] : memref<40xf32, #tpu.memory_space<smem>>
    memref.store %109, %arg5[%110] : memref<40xf32, #tpu.memory_space<smem>>
    %c28_i32 = arith.constant 28 : i32
    %112 = arith.index_cast %c28_i32 : i32 to index
    %113 = memref.load %arg3[%112] : memref<40xf32, #tpu.memory_space<smem>>
    %114 = arith.index_cast %c28_i32 : i32 to index
    %115 = memref.load %arg5[%114] : memref<40xf32, #tpu.memory_space<smem>>
    memref.store %113, %arg5[%114] : memref<40xf32, #tpu.memory_space<smem>>
    %c29_i32 = arith.constant 29 : i32
    %116 = arith.index_cast %c29_i32 : i32 to index
    %117 = memref.load %arg3[%116] : memref<40xf32, #tpu.memory_space<smem>>
    %118 = arith.index_cast %c29_i32 : i32 to index
    %119 = memref.load %arg5[%118] : memref<40xf32, #tpu.memory_space<smem>>
    memref.store %117, %arg5[%118] : memref<40xf32, #tpu.memory_space<smem>>
    %c30_i32 = arith.constant 30 : i32
    %120 = arith.index_cast %c30_i32 : i32 to index
    %121 = memref.load %arg3[%120] : memref<40xf32, #tpu.memory_space<smem>>
    %122 = arith.index_cast %c30_i32 : i32 to index
    %123 = memref.load %arg5[%122] : memref<40xf32, #tpu.memory_space<smem>>
    memref.store %121, %arg5[%122] : memref<40xf32, #tpu.memory_space<smem>>
    %c31_i32 = arith.constant 31 : i32
    %124 = arith.index_cast %c31_i32 : i32 to index
    %125 = memref.load %arg3[%124] : memref<40xf32, #tpu.memory_space<smem>>
    %126 = arith.index_cast %c31_i32 : i32 to index
    %127 = memref.load %arg5[%126] : memref<40xf32, #tpu.memory_space<smem>>
    memref.store %125, %arg5[%126] : memref<40xf32, #tpu.memory_space<smem>>
    %c32_i32 = arith.constant 32 : i32
    %128 = arith.index_cast %c32_i32 : i32 to index
    %129 = memref.load %arg3[%128] : memref<40xf32, #tpu.memory_space<smem>>
    %130 = arith.index_cast %c32_i32 : i32 to index
    %131 = memref.load %arg5[%130] : memref<40xf32, #tpu.memory_space<smem>>
    memref.store %129, %arg5[%130] : memref<40xf32, #tpu.memory_space<smem>>
    %c33_i32 = arith.constant 33 : i32
    %132 = arith.index_cast %c33_i32 : i32 to index
    %133 = memref.load %arg3[%132] : memref<40xf32, #tpu.memory_space<smem>>
    %134 = arith.index_cast %c33_i32 : i32 to index
    %135 = memref.load %arg5[%134] : memref<40xf32, #tpu.memory_space<smem>>
    memref.store %133, %arg5[%134] : memref<40xf32, #tpu.memory_space<smem>>
    %c34_i32 = arith.constant 34 : i32
    %136 = arith.index_cast %c34_i32 : i32 to index
    %137 = memref.load %arg3[%136] : memref<40xf32, #tpu.memory_space<smem>>
    %138 = arith.index_cast %c34_i32 : i32 to index
    %139 = memref.load %arg5[%138] : memref<40xf32, #tpu.memory_space<smem>>
    memref.store %137, %arg5[%138] : memref<40xf32, #tpu.memory_space<smem>>
    %c35_i32 = arith.constant 35 : i32
    %140 = arith.index_cast %c35_i32 : i32 to index
    %141 = memref.load %arg3[%140] : memref<40xf32, #tpu.memory_space<smem>>
    %142 = arith.index_cast %c35_i32 : i32 to index
    %143 = memref.load %arg5[%142] : memref<40xf32, #tpu.memory_space<smem>>
    memref.store %141, %arg5[%142] : memref<40xf32, #tpu.memory_space<smem>>
    %c36_i32 = arith.constant 36 : i32
    %144 = arith.index_cast %c36_i32 : i32 to index
    %145 = memref.load %arg3[%144] : memref<40xf32, #tpu.memory_space<smem>>
    %146 = arith.index_cast %c36_i32 : i32 to index
    %147 = memref.load %arg5[%146] : memref<40xf32, #tpu.memory_space<smem>>
    memref.store %145, %arg5[%146] : memref<40xf32, #tpu.memory_space<smem>>
    %c37_i32 = arith.constant 37 : i32
    %148 = arith.index_cast %c37_i32 : i32 to index
    %149 = memref.load %arg3[%148] : memref<40xf32, #tpu.memory_space<smem>>
    %150 = arith.index_cast %c37_i32 : i32 to index
    %151 = memref.load %arg5[%150] : memref<40xf32, #tpu.memory_space<smem>>
    memref.store %149, %arg5[%150] : memref<40xf32, #tpu.memory_space<smem>>
    %c38_i32 = arith.constant 38 : i32
    %152 = arith.index_cast %c38_i32 : i32 to index
    %153 = memref.load %arg3[%152] : memref<40xf32, #tpu.memory_space<smem>>
    %154 = arith.index_cast %c38_i32 : i32 to index
    %155 = memref.load %arg5[%154] : memref<40xf32, #tpu.memory_space<smem>>
    memref.store %153, %arg5[%154] : memref<40xf32, #tpu.memory_space<smem>>
    %c39_i32 = arith.constant 39 : i32
    %156 = arith.index_cast %c39_i32 : i32 to index
    %157 = memref.load %arg3[%156] : memref<40xf32, #tpu.memory_space<smem>>
    %158 = arith.index_cast %c39_i32 : i32 to index
    %159 = memref.load %arg5[%158] : memref<40xf32, #tpu.memory_space<smem>>
    memref.store %157, %arg5[%158] : memref<40xf32, #tpu.memory_space<smem>>
    %c40_i32 = arith.constant 40 : i32
    %c0_i32_0 = arith.constant 0 : i32
    %160 = arith.index_cast %c0_i32_0 : i32 to index
    %161 = memref.load %arg0[%160] : memref<8xi32, #tpu.memory_space<smem>>
    %162 = arith.index_cast %161 : i32 to index
    %163 = memref.load %arg5[%162] : memref<40xf32, #tpu.memory_space<smem>>
    %cst = arith.constant 1.000000e+00 : f32
    %164 = arith.addf %163, %cst : f32
    %cst_1 = arith.constant 1.000000e+00 : f32
    %165 = arith.divf %cst_1, %164 : f32
    %c0_i32_2 = arith.constant 0 : i32
    %c0_i32_3 = arith.constant 0 : i32
    %c0_i32_4 = arith.constant 0 : i32
    %166 = tpu.memref_slice %arg4[%161, %c0_i32_3, %c0_i32_4] : memref<40x29x128xf32, #tpu.memory_space<any>> -> memref<1x29x128xf32, #tpu.memory_space<any>>
    %167 = tpu.memref_squeeze %166 : memref<1x29x128xf32, #tpu.memory_space<any>> -> memref<29x128xf32, #tpu.memory_space<any>>
    %168 = tpu.memref_slice %arg7[%c0_i32_2] : memref<2x!tpu.dma_semaphore, #tpu.memory_space<semaphore_mem>> -> memref<1x!tpu.dma_semaphore, #tpu.memory_space<semaphore_mem>>
    %169 = tpu.memref_squeeze %168 : memref<1x!tpu.dma_semaphore, #tpu.memory_space<semaphore_mem>> -> memref<!tpu.dma_semaphore, #tpu.memory_space<semaphore_mem>>
    tpu.enqueue_dma source(%167 : memref<29x128xf32, #tpu.memory_space<any>>) target(%arg6 : memref<29x128xf32, #tpu.memory_space<vmem>>) target_semaphore(%169 : memref<!tpu.dma_semaphore, #tpu.memory_space<semaphore_mem>>)
    %c0_i32_5 = arith.constant 0 : i32
    %c0_i32_6 = arith.constant 0 : i32
    %c0_i32_7 = arith.constant 0 : i32
    %170 = tpu.memref_slice %arg4[%161, %c0_i32_6, %c0_i32_7] : memref<40x29x128xf32, #tpu.memory_space<any>> -> memref<1x29x128xf32, #tpu.memory_space<any>>
    %171 = tpu.memref_squeeze %170 : memref<1x29x128xf32, #tpu.memory_space<any>> -> memref<29x128xf32, #tpu.memory_space<any>>
    %172 = tpu.memref_slice %arg7[%c0_i32_5] : memref<2x!tpu.dma_semaphore, #tpu.memory_space<semaphore_mem>> -> memref<1x!tpu.dma_semaphore, #tpu.memory_space<semaphore_mem>>
    %173 = tpu.memref_squeeze %172 : memref<1x!tpu.dma_semaphore, #tpu.memory_space<semaphore_mem>> -> memref<!tpu.dma_semaphore, #tpu.memory_space<semaphore_mem>>
    tpu.wait_dma2 semaphore(%173 : memref<!tpu.dma_semaphore, #tpu.memory_space<semaphore_mem>>) src(%171 : memref<29x128xf32, #tpu.memory_space<any>>) dst(%arg6 : memref<29x128xf32, #tpu.memory_space<vmem>>)
    %c0 = arith.constant 0 : index
    %c0_8 = arith.constant 0 : index
    %174 = vector.load %arg6[%c0, %c0_8] : memref<29x128xf32, #tpu.memory_space<vmem>>, vector<29x128xf32>
    %175 = vector.broadcast %163 : f32 to vector<29x128xf32>
    %176 = arith.mulf %175, %174 : vector<29x128xf32>
    %177 = arith.index_cast %c0_i32_0 : i32 to index
    %c0_9 = arith.constant 0 : index
    %c0_10 = arith.constant 0 : index
    %178 = vector.load %arg1[%177, %c0_9, %c0_10] : memref<8x29x128xf32, #tpu.memory_space<vmem>>, vector<1x29x128xf32>
    %179 = vector.shape_cast %178 : vector<1x29x128xf32> to vector<29x128xf32>
    %180 = arith.addf %176, %179 : vector<29x128xf32>
    %181 = vector.broadcast %165 : f32 to vector<29x128xf32>
    %182 = arith.mulf %180, %181 : vector<29x128xf32>
    %c0_11 = arith.constant 0 : index
    %c0_12 = arith.constant 0 : index
    %183 = vector.load %arg6[%c0_11, %c0_12] : memref<29x128xf32, #tpu.memory_space<vmem>>, vector<29x128xf32>
    tpu.vector_store %arg6[%c0_11, %c0_12], %182 {strides = array<i32>} : memref<29x128xf32, #tpu.memory_space<vmem>>, vector<29x128xf32>,
    %c1_i32_13 = arith.constant 1 : i32
    %c0_i32_14 = arith.constant 0 : i32
    %c0_i32_15 = arith.constant 0 : i32
    %184 = tpu.memref_slice %arg4[%161, %c0_i32_14, %c0_i32_15] : memref<40x29x128xf32, #tpu.memory_space<any>> -> memref<1x29x128xf32, #tpu.memory_space<any>>
    %185 = tpu.memref_squeeze %184 : memref<1x29x128xf32, #tpu.memory_space<any>> -> memref<29x128xf32, #tpu.memory_space<any>>
    %186 = tpu.memref_slice %arg7[%c1_i32_13] : memref<2x!tpu.dma_semaphore, #tpu.memory_space<semaphore_mem>> -> memref<1x!tpu.dma_semaphore, #tpu.memory_space<semaphore_mem>>
    %187 = tpu.memref_squeeze %186 : memref<1x!tpu.dma_semaphore, #tpu.memory_space<semaphore_mem>> -> memref<!tpu.dma_semaphore, #tpu.memory_space<semaphore_mem>>
    tpu.enqueue_dma source(%arg6 : memref<29x128xf32, #tpu.memory_space<vmem>>) target(%185 : memref<29x128xf32, #tpu.memory_space<any>>) target_semaphore(%187 : memref<!tpu.dma_semaphore, #tpu.memory_space<semaphore_mem>>)
    %c1_i32_16 = arith.constant 1 : i32
    %c0_i32_17 = arith.constant 0 : i32
    %c0_i32_18 = arith.constant 0 : i32
    %188 = tpu.memref_slice %arg4[%161, %c0_i32_17, %c0_i32_18] : memref<40x29x128xf32, #tpu.memory_space<any>> -> memref<1x29x128xf32, #tpu.memory_space<any>>
    %189 = tpu.memref_squeeze %188 : memref<1x29x128xf32, #tpu.memory_space<any>> -> memref<29x128xf32, #tpu.memory_space<any>>
    %190 = tpu.memref_slice %arg7[%c1_i32_16] : memref<2x!tpu.dma_semaphore, #tpu.memory_space<semaphore_mem>> -> memref<1x!tpu.dma_semaphore, #tpu.memory_space<semaphore_mem>>
    %191 = tpu.memref_squeeze %190 : memref<1x!tpu.dma_semaphore, #tpu.memory_space<semaphore_mem>> -> memref<!tpu.dma_semaphore, #tpu.memory_space<semaphore_mem>>
    tpu.wait_dma2 semaphore(%191 : memref<!tpu.dma_semaphore, #tpu.memory_space<semaphore_mem>>) src(%arg6 : memref<29x128xf32, #tpu.memory_space<vmem>>) dst(%189 : memref<29x128xf32, #tpu.memory_space<any>>)
    %cst_19 = arith.constant 1.000000e+00 : f32
    %192 = arith.addf %163, %cst_19 : f32
    %193 = arith.index_cast %161 : i32 to index
    %194 = memref.load %arg5[%193] : memref<40xf32, #tpu.memory_space<smem>>
    memref.store %192, %arg5[%193] : memref<40xf32, #tpu.memory_space<smem>>
    %c1_i32_20 = arith.constant 1 : i32
    %195 = arith.index_cast %c1_i32_20 : i32 to index
    %196 = memref.load %arg0[%195] : memref<8xi32, #tpu.memory_space<smem>>
    %197 = arith.index_cast %196 : i32 to index
    %198 = memref.load %arg5[%197] : memref<40xf32, #tpu.memory_space<smem>>
    %cst_21 = arith.constant 1.000000e+00 : f32
    %199 = arith.addf %198, %cst_21 : f32
    %cst_22 = arith.constant 1.000000e+00 : f32
    %200 = arith.divf %cst_22, %199 : f32
    %c0_i32_23 = arith.constant 0 : i32
    %c0_i32_24 = arith.constant 0 : i32
    %c0_i32_25 = arith.constant 0 : i32
    %201 = tpu.memref_slice %arg4[%196, %c0_i32_24, %c0_i32_25] : memref<40x29x128xf32, #tpu.memory_space<any>> -> memref<1x29x128xf32, #tpu.memory_space<any>>
    %202 = tpu.memref_squeeze %201 : memref<1x29x128xf32, #tpu.memory_space<any>> -> memref<29x128xf32, #tpu.memory_space<any>>
    %203 = tpu.memref_slice %arg7[%c0_i32_23] : memref<2x!tpu.dma_semaphore, #tpu.memory_space<semaphore_mem>> -> memref<1x!tpu.dma_semaphore, #tpu.memory_space<semaphore_mem>>
    %204 = tpu.memref_squeeze %203 : memref<1x!tpu.dma_semaphore, #tpu.memory_space<semaphore_mem>> -> memref<!tpu.dma_semaphore, #tpu.memory_space<semaphore_mem>>
    tpu.enqueue_dma source(%202 : memref<29x128xf32, #tpu.memory_space<any>>) target(%arg6 : memref<29x128xf32, #tpu.memory_space<vmem>>) target_semaphore(%204 : memref<!tpu.dma_semaphore, #tpu.memory_space<semaphore_mem>>)
    %c0_i32_26 = arith.constant 0 : i32
    %c0_i32_27 = arith.constant 0 : i32
    %c0_i32_28 = arith.constant 0 : i32
    %205 = tpu.memref_slice %arg4[%196, %c0_i32_27, %c0_i32_28] : memref<40x29x128xf32, #tpu.memory_space<any>> -> memref<1x29x128xf32, #tpu.memory_space<any>>
    %206 = tpu.memref_squeeze %205 : memref<1x29x128xf32, #tpu.memory_space<any>> -> memref<29x128xf32, #tpu.memory_space<any>>
    %207 = tpu.memref_slice %arg7[%c0_i32_26] : memref<2x!tpu.dma_semaphore, #tpu.memory_space<semaphore_mem>> -> memref<1x!tpu.dma_semaphore, #tpu.memory_space<semaphore_mem>>
    %208 = tpu.memref_squeeze %207 : memref<1x!tpu.dma_semaphore, #tpu.memory_space<semaphore_mem>> -> memref<!tpu.dma_semaphore, #tpu.memory_space<semaphore_mem>>
    tpu.wait_dma2 semaphore(%208 : memref<!tpu.dma_semaphore, #tpu.memory_space<semaphore_mem>>) src(%206 : memref<29x128xf32, #tpu.memory_space<any>>) dst(%arg6 : memref<29x128xf32, #tpu.memory_space<vmem>>)
    %c0_29 = arith.constant 0 : index
    %c0_30 = arith.constant 0 : index
    %209 = vector.load %arg6[%c0_29, %c0_30] : memref<29x128xf32, #tpu.memory_space<vmem>>, vector<29x128xf32>
    %210 = vector.broadcast %198 : f32 to vector<29x128xf32>
    %211 = arith.mulf %210, %209 : vector<29x128xf32>
    %212 = arith.index_cast %c1_i32_20 : i32 to index
    %c0_31 = arith.constant 0 : index
    %c0_32 = arith.constant 0 : index
    %213 = vector.load %arg1[%212, %c0_31, %c0_32] : memref<8x29x128xf32, #tpu.memory_space<vmem>>, vector<1x29x128xf32>
    %214 = vector.shape_cast %213 : vector<1x29x128xf32> to vector<29x128xf32>
    %215 = arith.addf %211, %214 : vector<29x128xf32>
    %216 = vector.broadcast %200 : f32 to vector<29x128xf32>
    %217 = arith.mulf %215, %216 : vector<29x128xf32>
    %c0_33 = arith.constant 0 : index
    %c0_34 = arith.constant 0 : index
    %218 = vector.load %arg6[%c0_33, %c0_34] : memref<29x128xf32, #tpu.memory_space<vmem>>, vector<29x128xf32>
    tpu.vector_store %arg6[%c0_33, %c0_34], %217 {strides = array<i32>} : memref<29x128xf32, #tpu.memory_space<vmem>>, vector<29x128xf32>,
    %c1_i32_35 = arith.constant 1 : i32
    %c0_i32_36 = arith.constant 0 : i32
    %c0_i32_37 = arith.constant 0 : i32
    %219 = tpu.memref_slice %arg4[%196, %c0_i32_36, %c0_i32_37] : memref<40x29x128xf32, #tpu.memory_space<any>> -> memref<1x29x128xf32, #tpu.memory_space<any>>
    %220 = tpu.memref_squeeze %219 : memref<1x29x128xf32, #tpu.memory_space<any>> -> memref<29x128xf32, #tpu.memory_space<any>>
    %221 = tpu.memref_slice %arg7[%c1_i32_35] : memref<2x!tpu.dma_semaphore, #tpu.memory_space<semaphore_mem>> -> memref<1x!tpu.dma_semaphore, #tpu.memory_space<semaphore_mem>>
    %222 = tpu.memref_squeeze %221 : memref<1x!tpu.dma_semaphore, #tpu.memory_space<semaphore_mem>> -> memref<!tpu.dma_semaphore, #tpu.memory_space<semaphore_mem>>
    tpu.enqueue_dma source(%arg6 : memref<29x128xf32, #tpu.memory_space<vmem>>) target(%220 : memref<29x128xf32, #tpu.memory_space<any>>) target_semaphore(%222 : memref<!tpu.dma_semaphore, #tpu.memory_space<semaphore_mem>>)
    %c1_i32_38 = arith.constant 1 : i32
    %c0_i32_39 = arith.constant 0 : i32
    %c0_i32_40 = arith.constant 0 : i32
    %223 = tpu.memref_slice %arg4[%196, %c0_i32_39, %c0_i32_40] : memref<40x29x128xf32, #tpu.memory_space<any>> -> memref<1x29x128xf32, #tpu.memory_space<any>>
    %224 = tpu.memref_squeeze %223 : memref<1x29x128xf32, #tpu.memory_space<any>> -> memref<29x128xf32, #tpu.memory_space<any>>
    %225 = tpu.memref_slice %arg7[%c1_i32_38] : memref<2x!tpu.dma_semaphore, #tpu.memory_space<semaphore_mem>> -> memref<1x!tpu.dma_semaphore, #tpu.memory_space<semaphore_mem>>
    %226 = tpu.memref_squeeze %225 : memref<1x!tpu.dma_semaphore, #tpu.memory_space<semaphore_mem>> -> memref<!tpu.dma_semaphore, #tpu.memory_space<semaphore_mem>>
    tpu.wait_dma2 semaphore(%226 : memref<!tpu.dma_semaphore, #tpu.memory_space<semaphore_mem>>) src(%arg6 : memref<29x128xf32, #tpu.memory_space<vmem>>) dst(%224 : memref<29x128xf32, #tpu.memory_space<any>>)
    %cst_41 = arith.constant 1.000000e+00 : f32
    %227 = arith.addf %198, %cst_41 : f32
    %228 = arith.index_cast %196 : i32 to index
    %229 = memref.load %arg5[%228] : memref<40xf32, #tpu.memory_space<smem>>
    memref.store %227, %arg5[%228] : memref<40xf32, #tpu.memory_space<smem>>
    %c2_i32_42 = arith.constant 2 : i32
    %230 = arith.index_cast %c2_i32_42 : i32 to index
    %231 = memref.load %arg0[%230] : memref<8xi32, #tpu.memory_space<smem>>
    %232 = arith.index_cast %231 : i32 to index
    %233 = memref.load %arg5[%232] : memref<40xf32, #tpu.memory_space<smem>>
    %cst_43 = arith.constant 1.000000e+00 : f32
    %234 = arith.addf %233, %cst_43 : f32
    %cst_44 = arith.constant 1.000000e+00 : f32
    %235 = arith.divf %cst_44, %234 : f32
    %c0_i32_45 = arith.constant 0 : i32
    %c0_i32_46 = arith.constant 0 : i32
    %c0_i32_47 = arith.constant 0 : i32
    %236 = tpu.memref_slice %arg4[%231, %c0_i32_46, %c0_i32_47] : memref<40x29x128xf32, #tpu.memory_space<any>> -> memref<1x29x128xf32, #tpu.memory_space<any>>
    %237 = tpu.memref_squeeze %236 : memref<1x29x128xf32, #tpu.memory_space<any>> -> memref<29x128xf32, #tpu.memory_space<any>>
    %238 = tpu.memref_slice %arg7[%c0_i32_45] : memref<2x!tpu.dma_semaphore, #tpu.memory_space<semaphore_mem>> -> memref<1x!tpu.dma_semaphore, #tpu.memory_space<semaphore_mem>>
    %239 = tpu.memref_squeeze %238 : memref<1x!tpu.dma_semaphore, #tpu.memory_space<semaphore_mem>> -> memref<!tpu.dma_semaphore, #tpu.memory_space<semaphore_mem>>
    tpu.enqueue_dma source(%237 : memref<29x128xf32, #tpu.memory_space<any>>) target(%arg6 : memref<29x128xf32, #tpu.memory_space<vmem>>) target_semaphore(%239 : memref<!tpu.dma_semaphore, #tpu.memory_space<semaphore_mem>>)
    %c0_i32_48 = arith.constant 0 : i32
    %c0_i32_49 = arith.constant 0 : i32
    %c0_i32_50 = arith.constant 0 : i32
    %240 = tpu.memref_slice %arg4[%231, %c0_i32_49, %c0_i32_50] : memref<40x29x128xf32, #tpu.memory_space<any>> -> memref<1x29x128xf32, #tpu.memory_space<any>>
    %241 = tpu.memref_squeeze %240 : memref<1x29x128xf32, #tpu.memory_space<any>> -> memref<29x128xf32, #tpu.memory_space<any>>
    %242 = tpu.memref_slice %arg7[%c0_i32_48] : memref<2x!tpu.dma_semaphore, #tpu.memory_space<semaphore_mem>> -> memref<1x!tpu.dma_semaphore, #tpu.memory_space<semaphore_mem>>
    %243 = tpu.memref_squeeze %242 : memref<1x!tpu.dma_semaphore, #tpu.memory_space<semaphore_mem>> -> memref<!tpu.dma_semaphore, #tpu.memory_space<semaphore_mem>>
    tpu.wait_dma2 semaphore(%243 : memref<!tpu.dma_semaphore, #tpu.memory_space<semaphore_mem>>) src(%241 : memref<29x128xf32, #tpu.memory_space<any>>) dst(%arg6 : memref<29x128xf32, #tpu.memory_space<vmem>>)
    %c0_51 = arith.constant 0 : index
    %c0_52 = arith.constant 0 : index
    %244 = vector.load %arg6[%c0_51, %c0_52] : memref<29x128xf32, #tpu.memory_space<vmem>>, vector<29x128xf32>
    %245 = vector.broadcast %233 : f32 to vector<29x128xf32>
    %246 = arith.mulf %245, %244 : vector<29x128xf32>
    %247 = arith.index_cast %c2_i32_42 : i32 to index
    %c0_53 = arith.constant 0 : index
    %c0_54 = arith.constant 0 : index
    %248 = vector.load %arg1[%247, %c0_53, %c0_54] : memref<8x29x128xf32, #tpu.memory_space<vmem>>, vector<1x29x128xf32>
    %249 = vector.shape_cast %248 : vector<1x29x128xf32> to vector<29x128xf32>
    %250 = arith.addf %246, %249 : vector<29x128xf32>
    %251 = vector.broadcast %235 : f32 to vector<29x128xf32>
    %252 = arith.mulf %250, %251 : vector<29x128xf32>
    %c0_55 = arith.constant 0 : index
    %c0_56 = arith.constant 0 : index
    %253 = vector.load %arg6[%c0_55, %c0_56] : memref<29x128xf32, #tpu.memory_space<vmem>>, vector<29x128xf32>
    tpu.vector_store %arg6[%c0_55, %c0_56], %252 {strides = array<i32>} : memref<29x128xf32, #tpu.memory_space<vmem>>, vector<29x128xf32>,
    %c1_i32_57 = arith.constant 1 : i32
    %c0_i32_58 = arith.constant 0 : i32
    %c0_i32_59 = arith.constant 0 : i32
    %254 = tpu.memref_slice %arg4[%231, %c0_i32_58, %c0_i32_59] : memref<40x29x128xf32, #tpu.memory_space<any>> -> memref<1x29x128xf32, #tpu.memory_space<any>>
    %255 = tpu.memref_squeeze %254 : memref<1x29x128xf32, #tpu.memory_space<any>> -> memref<29x128xf32, #tpu.memory_space<any>>
    %256 = tpu.memref_slice %arg7[%c1_i32_57] : memref<2x!tpu.dma_semaphore, #tpu.memory_space<semaphore_mem>> -> memref<1x!tpu.dma_semaphore, #tpu.memory_space<semaphore_mem>>
    %257 = tpu.memref_squeeze %256 : memref<1x!tpu.dma_semaphore, #tpu.memory_space<semaphore_mem>> -> memref<!tpu.dma_semaphore, #tpu.memory_space<semaphore_mem>>
    tpu.enqueue_dma source(%arg6 : memref<29x128xf32, #tpu.memory_space<vmem>>) target(%255 : memref<29x128xf32, #tpu.memory_space<any>>) target_semaphore(%257 : memref<!tpu.dma_semaphore, #tpu.memory_space<semaphore_mem>>)
    %c1_i32_60 = arith.constant 1 : i32
    %c0_i32_61 = arith.constant 0 : i32
    %c0_i32_62 = arith.constant 0 : i32
    %258 = tpu.memref_slice %arg4[%231, %c0_i32_61, %c0_i32_62] : memref<40x29x128xf32, #tpu.memory_space<any>> -> memref<1x29x128xf32, #tpu.memory_space<any>>
    %259 = tpu.memref_squeeze %258 : memref<1x29x128xf32, #tpu.memory_space<any>> -> memref<29x128xf32, #tpu.memory_space<any>>
    %260 = tpu.memref_slice %arg7[%c1_i32_60] : memref<2x!tpu.dma_semaphore, #tpu.memory_space<semaphore_mem>> -> memref<1x!tpu.dma_semaphore, #tpu.memory_space<semaphore_mem>>
    %261 = tpu.memref_squeeze %260 : memref<1x!tpu.dma_semaphore, #tpu.memory_space<semaphore_mem>> -> memref<!tpu.dma_semaphore, #tpu.memory_space<semaphore_mem>>
    tpu.wait_dma2 semaphore(%261 : memref<!tpu.dma_semaphore, #tpu.memory_space<semaphore_mem>>) src(%arg6 : memref<29x128xf32, #tpu.memory_space<vmem>>) dst(%259 : memref<29x128xf32, #tpu.memory_space<any>>)
    %cst_63 = arith.constant 1.000000e+00 : f32
    %262 = arith.addf %233, %cst_63 : f32
    %263 = arith.index_cast %231 : i32 to index
    %264 = memref.load %arg5[%263] : memref<40xf32, #tpu.memory_space<smem>>
    memref.store %262, %arg5[%263] : memref<40xf32, #tpu.memory_space<smem>>
    %c3_i32_64 = arith.constant 3 : i32
    %265 = arith.index_cast %c3_i32_64 : i32 to index
    %266 = memref.load %arg0[%265] : memref<8xi32, #tpu.memory_space<smem>>
    %267 = arith.index_cast %266 : i32 to index
    %268 = memref.load %arg5[%267] : memref<40xf32, #tpu.memory_space<smem>>
    %cst_65 = arith.constant 1.000000e+00 : f32
    %269 = arith.addf %268, %cst_65 : f32
    %cst_66 = arith.constant 1.000000e+00 : f32
    %270 = arith.divf %cst_66, %269 : f32
    %c0_i32_67 = arith.constant 0 : i32
    %c0_i32_68 = arith.constant 0 : i32
    %c0_i32_69 = arith.constant 0 : i32
    %271 = tpu.memref_slice %arg4[%266, %c0_i32_68, %c0_i32_69] : memref<40x29x128xf32, #tpu.memory_space<any>> -> memref<1x29x128xf32, #tpu.memory_space<any>>
    %272 = tpu.memref_squeeze %271 : memref<1x29x128xf32, #tpu.memory_space<any>> -> memref<29x128xf32, #tpu.memory_space<any>>
    %273 = tpu.memref_slice %arg7[%c0_i32_67] : memref<2x!tpu.dma_semaphore, #tpu.memory_space<semaphore_mem>> -> memref<1x!tpu.dma_semaphore, #tpu.memory_space<semaphore_mem>>
    %274 = tpu.memref_squeeze %273 : memref<1x!tpu.dma_semaphore, #tpu.memory_space<semaphore_mem>> -> memref<!tpu.dma_semaphore, #tpu.memory_space<semaphore_mem>>
    tpu.enqueue_dma source(%272 : memref<29x128xf32, #tpu.memory_space<any>>) target(%arg6 : memref<29x128xf32, #tpu.memory_space<vmem>>) target_semaphore(%274 : memref<!tpu.dma_semaphore, #tpu.memory_space<semaphore_mem>>)
    %c0_i32_70 = arith.constant 0 : i32
    %c0_i32_71 = arith.constant 0 : i32
    %c0_i32_72 = arith.constant 0 : i32
    %275 = tpu.memref_slice %arg4[%266, %c0_i32_71, %c0_i32_72] : memref<40x29x128xf32, #tpu.memory_space<any>> -> memref<1x29x128xf32, #tpu.memory_space<any>>
    %276 = tpu.memref_squeeze %275 : memref<1x29x128xf32, #tpu.memory_space<any>> -> memref<29x128xf32, #tpu.memory_space<any>>
    %277 = tpu.memref_slice %arg7[%c0_i32_70] : memref<2x!tpu.dma_semaphore, #tpu.memory_space<semaphore_mem>> -> memref<1x!tpu.dma_semaphore, #tpu.memory_space<semaphore_mem>>
    %278 = tpu.memref_squeeze %277 : memref<1x!tpu.dma_semaphore, #tpu.memory_space<semaphore_mem>> -> memref<!tpu.dma_semaphore, #tpu.memory_space<semaphore_mem>>
    tpu.wait_dma2 semaphore(%278 : memref<!tpu.dma_semaphore, #tpu.memory_space<semaphore_mem>>) src(%276 : memref<29x128xf32, #tpu.memory_space<any>>) dst(%arg6 : memref<29x128xf32, #tpu.memory_space<vmem>>)
    %c0_73 = arith.constant 0 : index
    %c0_74 = arith.constant 0 : index
    %279 = vector.load %arg6[%c0_73, %c0_74] : memref<29x128xf32, #tpu.memory_space<vmem>>, vector<29x128xf32>
    %280 = vector.broadcast %268 : f32 to vector<29x128xf32>
    %281 = arith.mulf %280, %279 : vector<29x128xf32>
    %282 = arith.index_cast %c3_i32_64 : i32 to index
    %c0_75 = arith.constant 0 : index
    %c0_76 = arith.constant 0 : index
    %283 = vector.load %arg1[%282, %c0_75, %c0_76] : memref<8x29x128xf32, #tpu.memory_space<vmem>>, vector<1x29x128xf32>
    %284 = vector.shape_cast %283 : vector<1x29x128xf32> to vector<29x128xf32>
    %285 = arith.addf %281, %284 : vector<29x128xf32>
    %286 = vector.broadcast %270 : f32 to vector<29x128xf32>
    %287 = arith.mulf %285, %286 : vector<29x128xf32>
    %c0_77 = arith.constant 0 : index
    %c0_78 = arith.constant 0 : index
    %288 = vector.load %arg6[%c0_77, %c0_78] : memref<29x128xf32, #tpu.memory_space<vmem>>, vector<29x128xf32>
    tpu.vector_store %arg6[%c0_77, %c0_78], %287 {strides = array<i32>} : memref<29x128xf32, #tpu.memory_space<vmem>>, vector<29x128xf32>,
    %c1_i32_79 = arith.constant 1 : i32
    %c0_i32_80 = arith.constant 0 : i32
    %c0_i32_81 = arith.constant 0 : i32
    %289 = tpu.memref_slice %arg4[%266, %c0_i32_80, %c0_i32_81] : memref<40x29x128xf32, #tpu.memory_space<any>> -> memref<1x29x128xf32, #tpu.memory_space<any>>
    %290 = tpu.memref_squeeze %289 : memref<1x29x128xf32, #tpu.memory_space<any>> -> memref<29x128xf32, #tpu.memory_space<any>>
    %291 = tpu.memref_slice %arg7[%c1_i32_79] : memref<2x!tpu.dma_semaphore, #tpu.memory_space<semaphore_mem>> -> memref<1x!tpu.dma_semaphore, #tpu.memory_space<semaphore_mem>>
    %292 = tpu.memref_squeeze %291 : memref<1x!tpu.dma_semaphore, #tpu.memory_space<semaphore_mem>> -> memref<!tpu.dma_semaphore, #tpu.memory_space<semaphore_mem>>
    tpu.enqueue_dma source(%arg6 : memref<29x128xf32, #tpu.memory_space<vmem>>) target(%290 : memref<29x128xf32, #tpu.memory_space<any>>) target_semaphore(%292 : memref<!tpu.dma_semaphore, #tpu.memory_space<semaphore_mem>>)
    %c1_i32_82 = arith.constant 1 : i32
    %c0_i32_83 = arith.constant 0 : i32
    %c0_i32_84 = arith.constant 0 : i32
    %293 = tpu.memref_slice %arg4[%266, %c0_i32_83, %c0_i32_84] : memref<40x29x128xf32, #tpu.memory_space<any>> -> memref<1x29x128xf32, #tpu.memory_space<any>>
    %294 = tpu.memref_squeeze %293 : memref<1x29x128xf32, #tpu.memory_space<any>> -> memref<29x128xf32, #tpu.memory_space<any>>
    %295 = tpu.memref_slice %arg7[%c1_i32_82] : memref<2x!tpu.dma_semaphore, #tpu.memory_space<semaphore_mem>> -> memref<1x!tpu.dma_semaphore, #tpu.memory_space<semaphore_mem>>
    %296 = tpu.memref_squeeze %295 : memref<1x!tpu.dma_semaphore, #tpu.memory_space<semaphore_mem>> -> memref<!tpu.dma_semaphore, #tpu.memory_space<semaphore_mem>>
    tpu.wait_dma2 semaphore(%296 : memref<!tpu.dma_semaphore, #tpu.memory_space<semaphore_mem>>) src(%arg6 : memref<29x128xf32, #tpu.memory_space<vmem>>) dst(%294 : memref<29x128xf32, #tpu.memory_space<any>>)
    %cst_85 = arith.constant 1.000000e+00 : f32
    %297 = arith.addf %268, %cst_85 : f32
    %298 = arith.index_cast %266 : i32 to index
    %299 = memref.load %arg5[%298] : memref<40xf32, #tpu.memory_space<smem>>
    memref.store %297, %arg5[%298] : memref<40xf32, #tpu.memory_space<smem>>
    %c4_i32_86 = arith.constant 4 : i32
    %300 = arith.index_cast %c4_i32_86 : i32 to index
    %301 = memref.load %arg0[%300] : memref<8xi32, #tpu.memory_space<smem>>
    %302 = arith.index_cast %301 : i32 to index
    %303 = memref.load %arg5[%302] : memref<40xf32, #tpu.memory_space<smem>>
    %cst_87 = arith.constant 1.000000e+00 : f32
    %304 = arith.addf %303, %cst_87 : f32
    %cst_88 = arith.constant 1.000000e+00 : f32
    %305 = arith.divf %cst_88, %304 : f32
    %c0_i32_89 = arith.constant 0 : i32
    %c0_i32_90 = arith.constant 0 : i32
    %c0_i32_91 = arith.constant 0 : i32
    %306 = tpu.memref_slice %arg4[%301, %c0_i32_90, %c0_i32_91] : memref<40x29x128xf32, #tpu.memory_space<any>> -> memref<1x29x128xf32, #tpu.memory_space<any>>
    %307 = tpu.memref_squeeze %306 : memref<1x29x128xf32, #tpu.memory_space<any>> -> memref<29x128xf32, #tpu.memory_space<any>>
    %308 = tpu.memref_slice %arg7[%c0_i32_89] : memref<2x!tpu.dma_semaphore, #tpu.memory_space<semaphore_mem>> -> memref<1x!tpu.dma_semaphore, #tpu.memory_space<semaphore_mem>>
    %309 = tpu.memref_squeeze %308 : memref<1x!tpu.dma_semaphore, #tpu.memory_space<semaphore_mem>> -> memref<!tpu.dma_semaphore, #tpu.memory_space<semaphore_mem>>
    tpu.enqueue_dma source(%307 : memref<29x128xf32, #tpu.memory_space<any>>) target(%arg6 : memref<29x128xf32, #tpu.memory_space<vmem>>) target_semaphore(%309 : memref<!tpu.dma_semaphore, #tpu.memory_space<semaphore_mem>>)
    %c0_i32_92 = arith.constant 0 : i32
    %c0_i32_93 = arith.constant 0 : i32
    %c0_i32_94 = arith.constant 0 : i32
    %310 = tpu.memref_slice %arg4[%301, %c0_i32_93, %c0_i32_94] : memref<40x29x128xf32, #tpu.memory_space<any>> -> memref<1x29x128xf32, #tpu.memory_space<any>>
    %311 = tpu.memref_squeeze %310 : memref<1x29x128xf32, #tpu.memory_space<any>> -> memref<29x128xf32, #tpu.memory_space<any>>
    %312 = tpu.memref_slice %arg7[%c0_i32_92] : memref<2x!tpu.dma_semaphore, #tpu.memory_space<semaphore_mem>> -> memref<1x!tpu.dma_semaphore, #tpu.memory_space<semaphore_mem>>
    %313 = tpu.memref_squeeze %312 : memref<1x!tpu.dma_semaphore, #tpu.memory_space<semaphore_mem>> -> memref<!tpu.dma_semaphore, #tpu.memory_space<semaphore_mem>>
    tpu.wait_dma2 semaphore(%313 : memref<!tpu.dma_semaphore, #tpu.memory_space<semaphore_mem>>) src(%311 : memref<29x128xf32, #tpu.memory_space<any>>) dst(%arg6 : memref<29x128xf32, #tpu.memory_space<vmem>>)
    %c0_95 = arith.constant 0 : index
    %c0_96 = arith.constant 0 : index
    %314 = vector.load %arg6[%c0_95, %c0_96] : memref<29x128xf32, #tpu.memory_space<vmem>>, vector<29x128xf32>
    %315 = vector.broadcast %303 : f32 to vector<29x128xf32>
    %316 = arith.mulf %315, %314 : vector<29x128xf32>
    %317 = arith.index_cast %c4_i32_86 : i32 to index
    %c0_97 = arith.constant 0 : index
    %c0_98 = arith.constant 0 : index
    %318 = vector.load %arg1[%317, %c0_97, %c0_98] : memref<8x29x128xf32, #tpu.memory_space<vmem>>, vector<1x29x128xf32>
    %319 = vector.shape_cast %318 : vector<1x29x128xf32> to vector<29x128xf32>
    %320 = arith.addf %316, %319 : vector<29x128xf32>
    %321 = vector.broadcast %305 : f32 to vector<29x128xf32>
    %322 = arith.mulf %320, %321 : vector<29x128xf32>
    %c0_99 = arith.constant 0 : index
    %c0_100 = arith.constant 0 : index
    %323 = vector.load %arg6[%c0_99, %c0_100] : memref<29x128xf32, #tpu.memory_space<vmem>>, vector<29x128xf32>
    tpu.vector_store %arg6[%c0_99, %c0_100], %322 {strides = array<i32>} : memref<29x128xf32, #tpu.memory_space<vmem>>, vector<29x128xf32>,
    %c1_i32_101 = arith.constant 1 : i32
    %c0_i32_102 = arith.constant 0 : i32
    %c0_i32_103 = arith.constant 0 : i32
    %324 = tpu.memref_slice %arg4[%301, %c0_i32_102, %c0_i32_103] : memref<40x29x128xf32, #tpu.memory_space<any>> -> memref<1x29x128xf32, #tpu.memory_space<any>>
    %325 = tpu.memref_squeeze %324 : memref<1x29x128xf32, #tpu.memory_space<any>> -> memref<29x128xf32, #tpu.memory_space<any>>
    %326 = tpu.memref_slice %arg7[%c1_i32_101] : memref<2x!tpu.dma_semaphore, #tpu.memory_space<semaphore_mem>> -> memref<1x!tpu.dma_semaphore, #tpu.memory_space<semaphore_mem>>
    %327 = tpu.memref_squeeze %326 : memref<1x!tpu.dma_semaphore, #tpu.memory_space<semaphore_mem>> -> memref<!tpu.dma_semaphore, #tpu.memory_space<semaphore_mem>>
    tpu.enqueue_dma source(%arg6 : memref<29x128xf32, #tpu.memory_space<vmem>>) target(%325 : memref<29x128xf32, #tpu.memory_space<any>>) target_semaphore(%327 : memref<!tpu.dma_semaphore, #tpu.memory_space<semaphore_mem>>)
    %c1_i32_104 = arith.constant 1 : i32
    %c0_i32_105 = arith.constant 0 : i32
    %c0_i32_106 = arith.constant 0 : i32
    %328 = tpu.memref_slice %arg4[%301, %c0_i32_105, %c0_i32_106] : memref<40x29x128xf32, #tpu.memory_space<any>> -> memref<1x29x128xf32, #tpu.memory_space<any>>
    %329 = tpu.memref_squeeze %328 : memref<1x29x128xf32, #tpu.memory_space<any>> -> memref<29x128xf32, #tpu.memory_space<any>>
    %330 = tpu.memref_slice %arg7[%c1_i32_104] : memref<2x!tpu.dma_semaphore, #tpu.memory_space<semaphore_mem>> -> memref<1x!tpu.dma_semaphore, #tpu.memory_space<semaphore_mem>>
    %331 = tpu.memref_squeeze %330 : memref<1x!tpu.dma_semaphore, #tpu.memory_space<semaphore_mem>> -> memref<!tpu.dma_semaphore, #tpu.memory_space<semaphore_mem>>
    tpu.wait_dma2 semaphore(%331 : memref<!tpu.dma_semaphore, #tpu.memory_space<semaphore_mem>>) src(%arg6 : memref<29x128xf32, #tpu.memory_space<vmem>>) dst(%329 : memref<29x128xf32, #tpu.memory_space<any>>)
    %cst_107 = arith.constant 1.000000e+00 : f32
    %332 = arith.addf %303, %cst_107 : f32
    %333 = arith.index_cast %301 : i32 to index
    %334 = memref.load %arg5[%333] : memref<40xf32, #tpu.memory_space<smem>>
    memref.store %332, %arg5[%333] : memref<40xf32, #tpu.memory_space<smem>>
    %c5_i32_108 = arith.constant 5 : i32
    %335 = arith.index_cast %c5_i32_108 : i32 to index
    %336 = memref.load %arg0[%335] : memref<8xi32, #tpu.memory_space<smem>>
    %337 = arith.index_cast %336 : i32 to index
    %338 = memref.load %arg5[%337] : memref<40xf32, #tpu.memory_space<smem>>
    %cst_109 = arith.constant 1.000000e+00 : f32
    %339 = arith.addf %338, %cst_109 : f32
    %cst_110 = arith.constant 1.000000e+00 : f32
    %340 = arith.divf %cst_110, %339 : f32
    %c0_i32_111 = arith.constant 0 : i32
    %c0_i32_112 = arith.constant 0 : i32
    %c0_i32_113 = arith.constant 0 : i32
    %341 = tpu.memref_slice %arg4[%336, %c0_i32_112, %c0_i32_113] : memref<40x29x128xf32, #tpu.memory_space<any>> -> memref<1x29x128xf32, #tpu.memory_space<any>>
    %342 = tpu.memref_squeeze %341 : memref<1x29x128xf32, #tpu.memory_space<any>> -> memref<29x128xf32, #tpu.memory_space<any>>
    %343 = tpu.memref_slice %arg7[%c0_i32_111] : memref<2x!tpu.dma_semaphore, #tpu.memory_space<semaphore_mem>> -> memref<1x!tpu.dma_semaphore, #tpu.memory_space<semaphore_mem>>
    %344 = tpu.memref_squeeze %343 : memref<1x!tpu.dma_semaphore, #tpu.memory_space<semaphore_mem>> -> memref<!tpu.dma_semaphore, #tpu.memory_space<semaphore_mem>>
    tpu.enqueue_dma source(%342 : memref<29x128xf32, #tpu.memory_space<any>>) target(%arg6 : memref<29x128xf32, #tpu.memory_space<vmem>>) target_semaphore(%344 : memref<!tpu.dma_semaphore, #tpu.memory_space<semaphore_mem>>)
    %c0_i32_114 = arith.constant 0 : i32
    %c0_i32_115 = arith.constant 0 : i32
    %c0_i32_116 = arith.constant 0 : i32
    %345 = tpu.memref_slice %arg4[%336, %c0_i32_115, %c0_i32_116] : memref<40x29x128xf32, #tpu.memory_space<any>> -> memref<1x29x128xf32, #tpu.memory_space<any>>
    %346 = tpu.memref_squeeze %345 : memref<1x29x128xf32, #tpu.memory_space<any>> -> memref<29x128xf32, #tpu.memory_space<any>>
    %347 = tpu.memref_slice %arg7[%c0_i32_114] : memref<2x!tpu.dma_semaphore, #tpu.memory_space<semaphore_mem>> -> memref<1x!tpu.dma_semaphore, #tpu.memory_space<semaphore_mem>>
    %348 = tpu.memref_squeeze %347 : memref<1x!tpu.dma_semaphore, #tpu.memory_space<semaphore_mem>> -> memref<!tpu.dma_semaphore, #tpu.memory_space<semaphore_mem>>
    tpu.wait_dma2 semaphore(%348 : memref<!tpu.dma_semaphore, #tpu.memory_space<semaphore_mem>>) src(%346 : memref<29x128xf32, #tpu.memory_space<any>>) dst(%arg6 : memref<29x128xf32, #tpu.memory_space<vmem>>)
    %c0_117 = arith.constant 0 : index
    %c0_118 = arith.constant 0 : index
    %349 = vector.load %arg6[%c0_117, %c0_118] : memref<29x128xf32, #tpu.memory_space<vmem>>, vector<29x128xf32>
    %350 = vector.broadcast %338 : f32 to vector<29x128xf32>
    %351 = arith.mulf %350, %349 : vector<29x128xf32>
    %352 = arith.index_cast %c5_i32_108 : i32 to index
    %c0_119 = arith.constant 0 : index
    %c0_120 = arith.constant 0 : index
    %353 = vector.load %arg1[%352, %c0_119, %c0_120] : memref<8x29x128xf32, #tpu.memory_space<vmem>>, vector<1x29x128xf32>
    %354 = vector.shape_cast %353 : vector<1x29x128xf32> to vector<29x128xf32>
    %355 = arith.addf %351, %354 : vector<29x128xf32>
    %356 = vector.broadcast %340 : f32 to vector<29x128xf32>
    %357 = arith.mulf %355, %356 : vector<29x128xf32>
    %c0_121 = arith.constant 0 : index
    %c0_122 = arith.constant 0 : index
    %358 = vector.load %arg6[%c0_121, %c0_122] : memref<29x128xf32, #tpu.memory_space<vmem>>, vector<29x128xf32>
    tpu.vector_store %arg6[%c0_121, %c0_122], %357 {strides = array<i32>} : memref<29x128xf32, #tpu.memory_space<vmem>>, vector<29x128xf32>,
    %c1_i32_123 = arith.constant 1 : i32
    %c0_i32_124 = arith.constant 0 : i32
    %c0_i32_125 = arith.constant 0 : i32
    %359 = tpu.memref_slice %arg4[%336, %c0_i32_124, %c0_i32_125] : memref<40x29x128xf32, #tpu.memory_space<any>> -> memref<1x29x128xf32, #tpu.memory_space<any>>
    %360 = tpu.memref_squeeze %359 : memref<1x29x128xf32, #tpu.memory_space<any>> -> memref<29x128xf32, #tpu.memory_space<any>>
    %361 = tpu.memref_slice %arg7[%c1_i32_123] : memref<2x!tpu.dma_semaphore, #tpu.memory_space<semaphore_mem>> -> memref<1x!tpu.dma_semaphore, #tpu.memory_space<semaphore_mem>>
    %362 = tpu.memref_squeeze %361 : memref<1x!tpu.dma_semaphore, #tpu.memory_space<semaphore_mem>> -> memref<!tpu.dma_semaphore, #tpu.memory_space<semaphore_mem>>
    tpu.enqueue_dma source(%arg6 : memref<29x128xf32, #tpu.memory_space<vmem>>) target(%360 : memref<29x128xf32, #tpu.memory_space<any>>) target_semaphore(%362 : memref<!tpu.dma_semaphore, #tpu.memory_space<semaphore_mem>>)
    %c1_i32_126 = arith.constant 1 : i32
    %c0_i32_127 = arith.constant 0 : i32
    %c0_i32_128 = arith.constant 0 : i32
    %363 = tpu.memref_slice %arg4[%336, %c0_i32_127, %c0_i32_128] : memref<40x29x128xf32, #tpu.memory_space<any>> -> memref<1x29x128xf32, #tpu.memory_space<any>>
    %364 = tpu.memref_squeeze %363 : memref<1x29x128xf32, #tpu.memory_space<any>> -> memref<29x128xf32, #tpu.memory_space<any>>
    %365 = tpu.memref_slice %arg7[%c1_i32_126] : memref<2x!tpu.dma_semaphore, #tpu.memory_space<semaphore_mem>> -> memref<1x!tpu.dma_semaphore, #tpu.memory_space<semaphore_mem>>
    %366 = tpu.memref_squeeze %365 : memref<1x!tpu.dma_semaphore, #tpu.memory_space<semaphore_mem>> -> memref<!tpu.dma_semaphore, #tpu.memory_space<semaphore_mem>>
    tpu.wait_dma2 semaphore(%366 : memref<!tpu.dma_semaphore, #tpu.memory_space<semaphore_mem>>) src(%arg6 : memref<29x128xf32, #tpu.memory_space<vmem>>) dst(%364 : memref<29x128xf32, #tpu.memory_space<any>>)
    %cst_129 = arith.constant 1.000000e+00 : f32
    %367 = arith.addf %338, %cst_129 : f32
    %368 = arith.index_cast %336 : i32 to index
    %369 = memref.load %arg5[%368] : memref<40xf32, #tpu.memory_space<smem>>
    memref.store %367, %arg5[%368] : memref<40xf32, #tpu.memory_space<smem>>
    %c6_i32_130 = arith.constant 6 : i32
    %370 = arith.index_cast %c6_i32_130 : i32 to index
    %371 = memref.load %arg0[%370] : memref<8xi32, #tpu.memory_space<smem>>
    %372 = arith.index_cast %371 : i32 to index
    %373 = memref.load %arg5[%372] : memref<40xf32, #tpu.memory_space<smem>>
    %cst_131 = arith.constant 1.000000e+00 : f32
    %374 = arith.addf %373, %cst_131 : f32
    %cst_132 = arith.constant 1.000000e+00 : f32
    %375 = arith.divf %cst_132, %374 : f32
    %c0_i32_133 = arith.constant 0 : i32
    %c0_i32_134 = arith.constant 0 : i32
    %c0_i32_135 = arith.constant 0 : i32
    %376 = tpu.memref_slice %arg4[%371, %c0_i32_134, %c0_i32_135] : memref<40x29x128xf32, #tpu.memory_space<any>> -> memref<1x29x128xf32, #tpu.memory_space<any>>
    %377 = tpu.memref_squeeze %376 : memref<1x29x128xf32, #tpu.memory_space<any>> -> memref<29x128xf32, #tpu.memory_space<any>>
    %378 = tpu.memref_slice %arg7[%c0_i32_133] : memref<2x!tpu.dma_semaphore, #tpu.memory_space<semaphore_mem>> -> memref<1x!tpu.dma_semaphore, #tpu.memory_space<semaphore_mem>>
    %379 = tpu.memref_squeeze %378 : memref<1x!tpu.dma_semaphore, #tpu.memory_space<semaphore_mem>> -> memref<!tpu.dma_semaphore, #tpu.memory_space<semaphore_mem>>
    tpu.enqueue_dma source(%377 : memref<29x128xf32, #tpu.memory_space<any>>) target(%arg6 : memref<29x128xf32, #tpu.memory_space<vmem>>) target_semaphore(%379 : memref<!tpu.dma_semaphore, #tpu.memory_space<semaphore_mem>>)
    %c0_i32_136 = arith.constant 0 : i32
    %c0_i32_137 = arith.constant 0 : i32
    %c0_i32_138 = arith.constant 0 : i32
    %380 = tpu.memref_slice %arg4[%371, %c0_i32_137, %c0_i32_138] : memref<40x29x128xf32, #tpu.memory_space<any>> -> memref<1x29x128xf32, #tpu.memory_space<any>>
    %381 = tpu.memref_squeeze %380 : memref<1x29x128xf32, #tpu.memory_space<any>> -> memref<29x128xf32, #tpu.memory_space<any>>
    %382 = tpu.memref_slice %arg7[%c0_i32_136] : memref<2x!tpu.dma_semaphore, #tpu.memory_space<semaphore_mem>> -> memref<1x!tpu.dma_semaphore, #tpu.memory_space<semaphore_mem>>
    %383 = tpu.memref_squeeze %382 : memref<1x!tpu.dma_semaphore, #tpu.memory_space<semaphore_mem>> -> memref<!tpu.dma_semaphore, #tpu.memory_space<semaphore_mem>>
    tpu.wait_dma2 semaphore(%383 : memref<!tpu.dma_semaphore, #tpu.memory_space<semaphore_mem>>) src(%381 : memref<29x128xf32, #tpu.memory_space<any>>) dst(%arg6 : memref<29x128xf32, #tpu.memory_space<vmem>>)
    %c0_139 = arith.constant 0 : index
    %c0_140 = arith.constant 0 : index
    %384 = vector.load %arg6[%c0_139, %c0_140] : memref<29x128xf32, #tpu.memory_space<vmem>>, vector<29x128xf32>
    %385 = vector.broadcast %373 : f32 to vector<29x128xf32>
    %386 = arith.mulf %385, %384 : vector<29x128xf32>
    %387 = arith.index_cast %c6_i32_130 : i32 to index
    %c0_141 = arith.constant 0 : index
    %c0_142 = arith.constant 0 : index
    %388 = vector.load %arg1[%387, %c0_141, %c0_142] : memref<8x29x128xf32, #tpu.memory_space<vmem>>, vector<1x29x128xf32>
    %389 = vector.shape_cast %388 : vector<1x29x128xf32> to vector<29x128xf32>
    %390 = arith.addf %386, %389 : vector<29x128xf32>
    %391 = vector.broadcast %375 : f32 to vector<29x128xf32>
    %392 = arith.mulf %390, %391 : vector<29x128xf32>
    %c0_143 = arith.constant 0 : index
    %c0_144 = arith.constant 0 : index
    %393 = vector.load %arg6[%c0_143, %c0_144] : memref<29x128xf32, #tpu.memory_space<vmem>>, vector<29x128xf32>
    tpu.vector_store %arg6[%c0_143, %c0_144], %392 {strides = array<i32>} : memref<29x128xf32, #tpu.memory_space<vmem>>, vector<29x128xf32>,
    %c1_i32_145 = arith.constant 1 : i32
    %c0_i32_146 = arith.constant 0 : i32
    %c0_i32_147 = arith.constant 0 : i32
    %394 = tpu.memref_slice %arg4[%371, %c0_i32_146, %c0_i32_147] : memref<40x29x128xf32, #tpu.memory_space<any>> -> memref<1x29x128xf32, #tpu.memory_space<any>>
    %395 = tpu.memref_squeeze %394 : memref<1x29x128xf32, #tpu.memory_space<any>> -> memref<29x128xf32, #tpu.memory_space<any>>
    %396 = tpu.memref_slice %arg7[%c1_i32_145] : memref<2x!tpu.dma_semaphore, #tpu.memory_space<semaphore_mem>> -> memref<1x!tpu.dma_semaphore, #tpu.memory_space<semaphore_mem>>
    %397 = tpu.memref_squeeze %396 : memref<1x!tpu.dma_semaphore, #tpu.memory_space<semaphore_mem>> -> memref<!tpu.dma_semaphore, #tpu.memory_space<semaphore_mem>>
    tpu.enqueue_dma source(%arg6 : memref<29x128xf32, #tpu.memory_space<vmem>>) target(%395 : memref<29x128xf32, #tpu.memory_space<any>>) target_semaphore(%397 : memref<!tpu.dma_semaphore, #tpu.memory_space<semaphore_mem>>)
    %c1_i32_148 = arith.constant 1 : i32
    %c0_i32_149 = arith.constant 0 : i32
    %c0_i32_150 = arith.constant 0 : i32
    %398 = tpu.memref_slice %arg4[%371, %c0_i32_149, %c0_i32_150] : memref<40x29x128xf32, #tpu.memory_space<any>> -> memref<1x29x128xf32, #tpu.memory_space<any>>
    %399 = tpu.memref_squeeze %398 : memref<1x29x128xf32, #tpu.memory_space<any>> -> memref<29x128xf32, #tpu.memory_space<any>>
    %400 = tpu.memref_slice %arg7[%c1_i32_148] : memref<2x!tpu.dma_semaphore, #tpu.memory_space<semaphore_mem>> -> memref<1x!tpu.dma_semaphore, #tpu.memory_space<semaphore_mem>>
    %401 = tpu.memref_squeeze %400 : memref<1x!tpu.dma_semaphore, #tpu.memory_space<semaphore_mem>> -> memref<!tpu.dma_semaphore, #tpu.memory_space<semaphore_mem>>
    tpu.wait_dma2 semaphore(%401 : memref<!tpu.dma_semaphore, #tpu.memory_space<semaphore_mem>>) src(%arg6 : memref<29x128xf32, #tpu.memory_space<vmem>>) dst(%399 : memref<29x128xf32, #tpu.memory_space<any>>)
    %cst_151 = arith.constant 1.000000e+00 : f32
    %402 = arith.addf %373, %cst_151 : f32
    %403 = arith.index_cast %371 : i32 to index
    %404 = memref.load %arg5[%403] : memref<40xf32, #tpu.memory_space<smem>>
    memref.store %402, %arg5[%403] : memref<40xf32, #tpu.memory_space<smem>>
    %c7_i32_152 = arith.constant 7 : i32
    %405 = arith.index_cast %c7_i32_152 : i32 to index
    %406 = memref.load %arg0[%405] : memref<8xi32, #tpu.memory_space<smem>>
    %407 = arith.index_cast %406 : i32 to index
    %408 = memref.load %arg5[%407] : memref<40xf32, #tpu.memory_space<smem>>
    %cst_153 = arith.constant 1.000000e+00 : f32
    %409 = arith.addf %408, %cst_153 : f32
    %cst_154 = arith.constant 1.000000e+00 : f32
    %410 = arith.divf %cst_154, %409 : f32
    %c0_i32_155 = arith.constant 0 : i32
    %c0_i32_156 = arith.constant 0 : i32
    %c0_i32_157 = arith.constant 0 : i32
    %411 = tpu.memref_slice %arg4[%406, %c0_i32_156, %c0_i32_157] : memref<40x29x128xf32, #tpu.memory_space<any>> -> memref<1x29x128xf32, #tpu.memory_space<any>>
    %412 = tpu.memref_squeeze %411 : memref<1x29x128xf32, #tpu.memory_space<any>> -> memref<29x128xf32, #tpu.memory_space<any>>
    %413 = tpu.memref_slice %arg7[%c0_i32_155] : memref<2x!tpu.dma_semaphore, #tpu.memory_space<semaphore_mem>> -> memref<1x!tpu.dma_semaphore, #tpu.memory_space<semaphore_mem>>
    %414 = tpu.memref_squeeze %413 : memref<1x!tpu.dma_semaphore, #tpu.memory_space<semaphore_mem>> -> memref<!tpu.dma_semaphore, #tpu.memory_space<semaphore_mem>>
    tpu.enqueue_dma source(%412 : memref<29x128xf32, #tpu.memory_space<any>>) target(%arg6 : memref<29x128xf32, #tpu.memory_space<vmem>>) target_semaphore(%414 : memref<!tpu.dma_semaphore, #tpu.memory_space<semaphore_mem>>)
    %c0_i32_158 = arith.constant 0 : i32
    %c0_i32_159 = arith.constant 0 : i32
    %c0_i32_160 = arith.constant 0 : i32
    %415 = tpu.memref_slice %arg4[%406, %c0_i32_159, %c0_i32_160] : memref<40x29x128xf32, #tpu.memory_space<any>> -> memref<1x29x128xf32, #tpu.memory_space<any>>
    %416 = tpu.memref_squeeze %415 : memref<1x29x128xf32, #tpu.memory_space<any>> -> memref<29x128xf32, #tpu.memory_space<any>>
    %417 = tpu.memref_slice %arg7[%c0_i32_158] : memref<2x!tpu.dma_semaphore, #tpu.memory_space<semaphore_mem>> -> memref<1x!tpu.dma_semaphore, #tpu.memory_space<semaphore_mem>>
    %418 = tpu.memref_squeeze %417 : memref<1x!tpu.dma_semaphore, #tpu.memory_space<semaphore_mem>> -> memref<!tpu.dma_semaphore, #tpu.memory_space<semaphore_mem>>
    tpu.wait_dma2 semaphore(%418 : memref<!tpu.dma_semaphore, #tpu.memory_space<semaphore_mem>>) src(%416 : memref<29x128xf32, #tpu.memory_space<any>>) dst(%arg6 : memref<29x128xf32, #tpu.memory_space<vmem>>)
    %c0_161 = arith.constant 0 : index
    %c0_162 = arith.constant 0 : index
    %419 = vector.load %arg6[%c0_161, %c0_162] : memref<29x128xf32, #tpu.memory_space<vmem>>, vector<29x128xf32>
    %420 = vector.broadcast %408 : f32 to vector<29x128xf32>
    %421 = arith.mulf %420, %419 : vector<29x128xf32>
    %422 = arith.index_cast %c7_i32_152 : i32 to index
    %c0_163 = arith.constant 0 : index
    %c0_164 = arith.constant 0 : index
    %423 = vector.load %arg1[%422, %c0_163, %c0_164] : memref<8x29x128xf32, #tpu.memory_space<vmem>>, vector<1x29x128xf32>
    %424 = vector.shape_cast %423 : vector<1x29x128xf32> to vector<29x128xf32>
    %425 = arith.addf %421, %424 : vector<29x128xf32>
    %426 = vector.broadcast %410 : f32 to vector<29x128xf32>
    %427 = arith.mulf %425, %426 : vector<29x128xf32>
    %c0_165 = arith.constant 0 : index
    %c0_166 = arith.constant 0 : index
    %428 = vector.load %arg6[%c0_165, %c0_166] : memref<29x128xf32, #tpu.memory_space<vmem>>, vector<29x128xf32>
    tpu.vector_store %arg6[%c0_165, %c0_166], %427 {strides = array<i32>} : memref<29x128xf32, #tpu.memory_space<vmem>>, vector<29x128xf32>,
    %c1_i32_167 = arith.constant 1 : i32
    %c0_i32_168 = arith.constant 0 : i32
    %c0_i32_169 = arith.constant 0 : i32
    %429 = tpu.memref_slice %arg4[%406, %c0_i32_168, %c0_i32_169] : memref<40x29x128xf32, #tpu.memory_space<any>> -> memref<1x29x128xf32, #tpu.memory_space<any>>
    %430 = tpu.memref_squeeze %429 : memref<1x29x128xf32, #tpu.memory_space<any>> -> memref<29x128xf32, #tpu.memory_space<any>>
    %431 = tpu.memref_slice %arg7[%c1_i32_167] : memref<2x!tpu.dma_semaphore, #tpu.memory_space<semaphore_mem>> -> memref<1x!tpu.dma_semaphore, #tpu.memory_space<semaphore_mem>>
    %432 = tpu.memref_squeeze %431 : memref<1x!tpu.dma_semaphore, #tpu.memory_space<semaphore_mem>> -> memref<!tpu.dma_semaphore, #tpu.memory_space<semaphore_mem>>
    tpu.enqueue_dma source(%arg6 : memref<29x128xf32, #tpu.memory_space<vmem>>) target(%430 : memref<29x128xf32, #tpu.memory_space<any>>) target_semaphore(%432 : memref<!tpu.dma_semaphore, #tpu.memory_space<semaphore_mem>>)
    %c1_i32_170 = arith.constant 1 : i32
    %c0_i32_171 = arith.constant 0 : i32
    %c0_i32_172 = arith.constant 0 : i32
    %433 = tpu.memref_slice %arg4[%406, %c0_i32_171, %c0_i32_172] : memref<40x29x128xf32, #tpu.memory_space<any>> -> memref<1x29x128xf32, #tpu.memory_space<any>>
    %434 = tpu.memref_squeeze %433 : memref<1x29x128xf32, #tpu.memory_space<any>> -> memref<29x128xf32, #tpu.memory_space<any>>
    %435 = tpu.memref_slice %arg7[%c1_i32_170] : memref<2x!tpu.dma_semaphore, #tpu.memory_space<semaphore_mem>> -> memref<1x!tpu.dma_semaphore, #tpu.memory_space<semaphore_mem>>
    %436 = tpu.memref_squeeze %435 : memref<1x!tpu.dma_semaphore, #tpu.memory_space<semaphore_mem>> -> memref<!tpu.dma_semaphore, #tpu.memory_space<semaphore_mem>>
    tpu.wait_dma2 semaphore(%436 : memref<!tpu.dma_semaphore, #tpu.memory_space<semaphore_mem>>) src(%arg6 : memref<29x128xf32, #tpu.memory_space<vmem>>) dst(%434 : memref<29x128xf32, #tpu.memory_space<any>>)
    %cst_173 = arith.constant 1.000000e+00 : f32
    %437 = arith.addf %408, %cst_173 : f32
    %438 = arith.index_cast %406 : i32 to index
    %439 = memref.load %arg5[%438] : memref<40xf32, #tpu.memory_space<smem>>
    memref.store %437, %arg5[%438] : memref<40xf32, #tpu.memory_space<smem>>
    %c8_i32_174 = arith.constant 8 : i32
    return
  }
}

</mosaic_0001>

<llo_original>
// kernel: center_count_step.1
$region0: #{center_count_step.1}
  #allocation0 [shape = 'u32[]', space=smem, size = 0x4, offset = 0x4, fixed_abs, tag = 'smem constant byte address 0x4 - core index']
  #allocation1 [shape = 'u32[72,128]{1,0:T(1,128)}', space=vmem, size = 0x9000, scoped, tag = 'internal scratch']
  #allocation2 [shape = 'f32[29,128]{1,0:T(8,128)}', space=vmem, size = 0x4000, scoped, tag = 'scratch operand']
  #allocation3 [shape = 's32[2]{0}', space=sflag, size = 0x8, scoped, tag = 'scratch operand']
  #allocation10 [shape = 's32[]', space=sflag, size = 0x4, offset = 0, fixed_abs, tag = 'sflag constant byte address 0x0 - dummy sync flag']
  #allocation11 [shape = 's32[]', space=sflag, size = 0x4, offset = 0, fixed_abs, tag = 'sflag constant byte address 0x0 - dummy sync flag']
  #allocation12 [shape = 's32[]', space=sflag, size = 0x4, offset = 0, fixed_abs, tag = 'sflag constant byte address 0x0 - dummy sync flag']
  #allocation13 [shape = 's32[]', space=sflag, size = 0x4, offset = 0, fixed_abs, tag = 'sflag constant byte address 0x0 - dummy sync flag']
  #allocation14 [shape = 's32[]', space=sflag, size = 0x4, offset = 0, fixed_abs, tag = 'sflag constant byte address 0x0 - dummy sync flag']
  #allocation15 [shape = 's32[]', space=sflag, size = 0x4, offset = 0, fixed_abs, tag = 'sflag constant byte address 0x0 - dummy sync flag']
  #allocation16 [shape = 's32[]', space=sflag, size = 0x4, offset = 0, fixed_abs, tag = 'sflag constant byte address 0x0 - dummy sync flag']
  #allocation17 [shape = 's32[]', space=sflag, size = 0x4, offset = 0, fixed_abs, tag = 'sflag constant byte address 0x0 - dummy sync flag']
  #allocation18 [shape = 's32[]', space=sflag, size = 0x4, offset = 0, fixed_abs, tag = 'sflag constant byte address 0x0 - dummy sync flag']
  #allocation19 [shape = 's32[]', space=sflag, size = 0x4, offset = 0, fixed_abs, tag = 'sflag constant byte address 0x0 - dummy sync flag']
  #allocation20 [shape = 's32[]', space=sflag, size = 0x4, offset = 0, fixed_abs, tag = 'sflag constant byte address 0x0 - dummy sync flag']
  #allocation21 [shape = 's32[]', space=sflag, size = 0x4, offset = 0, fixed_abs, tag = 'sflag constant byte address 0x0 - dummy sync flag']
  #allocation22 [shape = 's32[]', space=sflag, size = 0x4, offset = 0, fixed_abs, tag = 'sflag constant byte address 0x0 - dummy sync flag']
  #allocation23 [shape = 's32[]', space=sflag, size = 0x4, offset = 0, fixed_abs, tag = 'sflag constant byte address 0x0 - dummy sync flag']
  #allocation24 [shape = 's32[]', space=sflag, size = 0x4, offset = 0, fixed_abs, tag = 'sflag constant byte address 0x0 - dummy sync flag']
  #allocation25 [shape = 's32[]', space=sflag, size = 0x4, offset = 0, fixed_abs, tag = 'sflag constant byte address 0x0 - dummy sync flag']
  %s0 = inlined_call_operand.vmem [shape: s32[8], index: 0, kind: input, shape index: {}]
  %s1 = inlined_call_operand.vmem [shape: f32[8,29,128], index: 1, kind: input, shape index: {}]
  %s2 = inlined_call_operand.vmem [shape: f32[40,29,128], index: 2, kind: input, shape index: {}, may-alias: {2,4}]
  %s3 = inlined_call_operand.vmem [shape: f32[40], index: 3, kind: input, shape index: {}]
  %s4 = inlined_call_operand.vmem [shape: f32[40,29,128], index: 4, kind: output, shape index: {0}, may-alias: {2,4}]
  %s5 = inlined_call_operand.hbm [shape: f32[40], index: 5, kind: output, shape index: {1}]
  %6 = xla_tuple %s4, %s5
  %s7 = sld [smem:[#allocation0]]
  $region382: #{center_count_step.1} parent=0
    _
  %s9 = ssub.s32 1, %s7
  %s10 = scalar_select 0, %s9, %s7
  $region1: #{center_count_step.1} parent=0
    #allocation4 [shape = 'u8[512]{0}', space=smem, size = 0x200, scoped, tag = 'input window, operand 0, single buffered']
    #allocation5 [shape = 's32[1]{0}', space=sflag, size = 0x4, scoped, tag = 'scoped memory for center_count_step.1']
    #allocation6 [shape = 's32[1]{0}', space=sflag, size = 0x4, scoped, tag = 'scoped memory for center_count_step.1']
    #allocation7 [shape = 'u8[512]{0}', space=smem, size = 0x200, scoped, tag = 'input window, operand 3, single buffered']
    #allocation8 [shape = 's32[1]{0}', space=sflag, size = 0x4, scoped, tag = 'scoped memory for center_count_step.1']
    #allocation9 [shape = 'u8[512]{0}', space=smem, size = 0x200, scoped, tag = 'output window, operand 1, single buffered']
    %11 = vsyncpa [#allocation6], 0
    %12 = vsyncpa [#allocation8], 0
    %13 = vsyncpa [#allocation5], 0
    // Predicated region
    $region2: #{center_count_step.1} parent=1 // pred_check
      _
    $region3: #{center_count_step.1} parent=1 // pred_check_branch
      %15 = sbr.rel (0) target = $region5
    $region4: #{center_count_step.1} parent=1 // pred_region
      %17 = vsyncadd [#allocation6], 0
      %s19 = sshll.u32 %s0, 4
      %s20 = int_to_ptr.vmem [resolvable:$true] %s19
      %22 = dma.vmem_to_smem %s20, 16, [#allocation4], [#allocation6]
    $region5: #{center_count_step.1} parent=1 // pred_fallthru
      _
    // Predicated region
    $region6: #{center_count_step.1} parent=1 // pred_check
      _
    $region7: #{center_count_step.1} parent=1 // pred_check_branch
      %24 = sbr.rel (0) target = $region9
    $region8: #{center_count_step.1} parent=1 // pred_region
      _
    $region9: #{center_count_step.1} parent=1 // pred_fallthru
      _
    // Predicated region
    $region10: #{center_count_step.1} parent=1 // pred_check
      _
    $region11: #{center_count_step.1} parent=1 // pred_check_branch
      %26 = sbr.rel (0) target = $region13
    $region12: #{center_count_step.1} parent=1 // pred_region
      %28 = vsyncadd [#allocation8], 0
      %s30 = sshll.u32 %s3, 4
      %s31 = int_to_ptr.vmem [resolvable:$true] %s30
      %33 = dma.vmem_to_smem %s31, 16, [#allocation7], [#allocation8]
    $region13: #{center_count_step.1} parent=1 // pred_fallthru
      _
    // Predicated region
    $region14: #{center_count_step.1} parent=1 // pred_check
      _
    $region15: #{center_count_step.1} parent=1 // pred_check_branch
      %35 = sbr.rel (0) target = $region17
    $region16: #{center_count_step.1} parent=1 // pred_region
      %37 = dma.done [#allocation6], 16
    $region17: #{center_count_step.1} parent=1 // pred_fallthru
      _
    // Predicated region
    $region18: #{center_count_step.1} parent=1 // pred_check
      _
    $region19: #{center_count_step.1} parent=1 // pred_check_branch
      %39 = sbr.rel (0) target = $region21
    $region20: #{center_count_step.1} parent=1 // pred_region
      %41 = dma.done [#allocation8], 16
    $region21: #{center_count_step.1} parent=1 // pred_fallthru
      _
    %42 = sfence
    %s43 = sld [smem:[#allocation7]]
    %s44 = scalar_lea.smem [#allocation9], 0
    %45 = sst [smem:[%s44]] %s43
    %s46 = sld [smem:[#allocation7 + $0x1]]
    %s47 = scalar_lea.smem [#allocation9], 1
    %48 = sst [smem:[%s47]] %s46
    %s49 = sld [smem:[#allocation7 + $0x2]]
    %s50 = scalar_lea.smem [#allocation9], 2
    %51 = sst [smem:[%s50]] %s49
    %s52 = sld [smem:[#allocation7 + $0x3]]
    %s53 = scalar_lea.smem [#allocation9], 3
    %54 = sst [smem:[%s53]] %s52
    %s55 = sld [smem:[#allocation7 + $0x4]]
    %s56 = scalar_lea.smem [#allocation9], 4
    %57 = sst [smem:[%s56]] %s55
    %s58 = sld [smem:[#allocation7 + $0x5]]
    %s59 = scalar_lea.smem [#allocation9], 5
    %60 = sst [smem:[%s59]] %s58
    %s61 = sld [smem:[#allocation7 + $0x6]]
    %s62 = scalar_lea.smem [#allocation9], 6
    %63 = sst [smem:[%s62]] %s61
    %s64 = sld [smem:[#allocation7 + $0x7]]
    %s65 = scalar_lea.smem [#allocation9], 7
    %66 = sst [smem:[%s65]] %s64
    %s67 = sld [smem:[#allocation7 + $0x8]]
    %s68 = scalar_lea.smem [#allocation9], 8
    %69 = sst [smem:[%s68]] %s67
    %s70 = sld [smem:[#allocation7 + $0x9]]
    %s71 = scalar_lea.smem [#allocation9], 9
    %72 = sst [smem:[%s71]] %s70
    %s73 = sld [smem:[#allocation7 + $0xa]]
    %s74 = scalar_lea.smem [#allocation9], 10
    %75 = sst [smem:[%s74]] %s73
    %s76 = sld [smem:[#allocation7 + $0xb]]
    %s77 = scalar_lea.smem [#allocation9], 11
    %78 = sst [smem:[%s77]] %s76
    %s79 = sld [smem:[#allocation7 + $0xc]]
    %s80 = scalar_lea.smem [#allocation9], 12
    %81 = sst [smem:[%s80]] %s79
    %s82 = sld [smem:[#allocation7 + $0xd]]
    %s83 = scalar_lea.smem [#allocation9], 13
    %84 = sst [smem:[%s83]] %s82
    %s85 = sld [smem:[#allocation7 + $0xe]]
    %s86 = scalar_lea.smem [#allocation9], 14
    %87 = sst [smem:[%s86]] %s85
    %s88 = sld [smem:[#allocation7 + $0xf]]
    %s89 = scalar_lea.smem [#allocation9], 15
    %90 = sst [smem:[%s89]] %s88
    %s91 = sld [smem:[#allocation7 + $0x10]]
    %s92 = scalar_lea.smem [#allocation9], 16
    %93 = sst [smem:[%s92]] %s91
    %s94 = sld [smem:[#allocation7 + $0x11]]
    %s95 = scalar_lea.smem [#allocation9], 17
    %96 = sst [smem:[%s95]] %s94
    %s97 = sld [smem:[#allocation7 + $0x12]]
    %s98 = scalar_lea.smem [#allocation9], 18
    %99 = sst [smem:[%s98]] %s97
    %s100 = sld [smem:[#allocation7 + $0x13]]
    %s101 = scalar_lea.smem [#allocation9], 19
    %102 = sst [smem:[%s101]] %s100
    %s103 = sld [smem:[#allocation7 + $0x14]]
    %s104 = scalar_lea.smem [#allocation9], 20
    %105 = sst [smem:[%s104]] %s103
    %s106 = sld [smem:[#allocation7 + $0x15]]
    %s107 = scalar_lea.smem [#allocation9], 21
    %108 = sst [smem:[%s107]] %s106
    %s109 = sld [smem:[#allocation7 + $0x16]]
    %s110 = scalar_lea.smem [#allocation9], 22
    %111 = sst [smem:[%s110]] %s109
    %s112 = sld [smem:[#allocation7 + $0x17]]
    %s113 = scalar_lea.smem [#allocation9], 23
    %114 = sst [smem:[%s113]] %s112
    %s115 = sld [smem:[#allocation7 + $0x18]]
    %s116 = scalar_lea.smem [#allocation9], 24
    %117 = sst [smem:[%s116]] %s115
    %s118 = sld [smem:[#allocation7 + $0x19]]
    %s119 = scalar_lea.smem [#allocation9], 25
    %120 = sst [smem:[%s119]] %s118
    %s121 = sld [smem:[#allocation7 + $0x1a]]
    %s122 = scalar_lea.smem [#allocation9], 26
    %123 = sst [smem:[%s122]] %s121
    %s124 = sld [smem:[#allocation7 + $0x1b]]
    %s125 = scalar_lea.smem [#allocation9], 27
    %126 = sst [smem:[%s125]] %s124
    %s127 = sld [smem:[#allocation7 + $0x1c]]
    %s128 = scalar_lea.smem [#allocation9], 28
    %129 = sst [smem:[%s128]] %s127
    %s130 = sld [smem:[#allocation7 + $0x1d]]
    %s131 = scalar_lea.smem [#allocation9], 29
    %132 = sst [smem:[%s131]] %s130
    %s133 = sld [smem:[#allocation7 + $0x1e]]
    %s134 = scalar_lea.smem [#allocation9], 30
    %135 = sst [smem:[%s134]] %s133
    %s136 = sld [smem:[#allocation7 + $0x1f]]
    %s137 = scalar_lea.smem [#allocation9], 31
    %138 = sst [smem:[%s137]] %s136
    %s139 = sld [smem:[#allocation7 + $0x20]]
    %s140 = scalar_lea.smem [#allocation9], 32
    %141 = sst [smem:[%s140]] %s139
    %s142 = sld [smem:[#allocation7 + $0x21]]
    %s143 = scalar_lea.smem [#allocation9], 33
    %144 = sst [smem:[%s143]] %s142
    %s145 = sld [smem:[#allocation7 + $0x22]]
    %s146 = scalar_lea.smem [#allocation9], 34
    %147 = sst [smem:[%s146]] %s145
    %s148 = sld [smem:[#allocation7 + $0x23]]
    %s149 = scalar_lea.smem [#allocation9], 35
    %150 = sst [smem:[%s149]] %s148
    %s151 = sld [smem:[#allocation7 + $0x24]]
    %s152 = scalar_lea.smem [#allocation9], 36
    %153 = sst [smem:[%s152]] %s151
    %s154 = sld [smem:[#allocation7 + $0x25]]
    %s155 = scalar_lea.smem [#allocation9], 37
    %156 = sst [smem:[%s155]] %s154
    %s157 = sld [smem:[#allocation7 + $0x26]]
    %s158 = scalar_lea.smem [#allocation9], 38
    %159 = sst [smem:[%s158]] %s157
    %s160 = sld [smem:[#allocation7 + $0x27]]
    %s161 = scalar_lea.smem [#allocation9], 39
    %162 = sst [smem:[%s161]] %s160
    %s163 = sld [smem:[#allocation4]]
    %s164 = sld [smem:[#allocation9 + %s163]]
    %s165 = sadd.f32 %s164, 1.0
    %v166 = vstv %s165
    %v167 = vrcp.pop %v166
    %v168 = vmul.f32 %v166, %v167
    %v169 = vsub.f32 1.0, %v168
    %v170 = vmul.f32 %v167, %v169
    %v171 = vadd.f32 %v167, %v170
    %vm172 = vweird.f32 %v166
    %vm173 = vweird.f32 %v167
    %vm174 = vmor %vm172, %vm173
    %v175 = vsel %vm174, %v167, %v171
    %v176 = vand.u32 2147483647, %v166
    %vm177 = vcmp.eq.f32.partialorder %v176, 8.507059e+37
    %v178 = vand.u32 %v166, 2147483648
    %v179 = vor.u32 1.1754944e-38, %v178
    %v180 = vsel %vm177, %v179, %v175
    %s181 = vtos %v180
    %s182 = smul.u32 %s163, 32
    %s183 = scalar_lea.vmem %s4, %s182
    // Predicated region
    $region22: #{center_count_step.1} parent=1 // pred_check
      _
    $region23: #{center_count_step.1} parent=1 // pred_check_branch
      %185 = sbr.rel (0) target = $region25
    $region24: #{center_count_step.1} parent=1 // pred_region
      %s186 = scalar_lea.vmem %s183, 24
      %s187 = scalar_lea.vmem [#allocation2], 24
      loop: start=0, step=1, limit=1
      $region26: #{center_count_step.1} parent=24 // loop_pre_header
        _
      $region27: #{center_count_step.1} parent=24 // loop_header
        %s189 = sphi 0, %s193
        %p190 = scmp.ge.s32.totalorder %s189, 1
        %s194 = sphi %s183, %s183
        %s195 = sphi [#allocation2], [#allocation2]
      $region28: #{center_count_step.1} parent=24 // loop_header_branch
        %192 = sbr.rel (%p190) target = $region32
      $region29: #{center_count_step.1} parent=24 // loop_body
        %v196 = vld [vmem:[%s194] sm:$0xff]
        %197 = vst [vmem:[%s195] sm:$0xff] %v196
        %v198 = vld [vmem:[%s194 + $0x8] sm:$0xff]
        %199 = vst [vmem:[%s195 + $0x8] sm:$0xff] %v198
        %v200 = vld [vmem:[%s194 + $0x10] sm:$0xff]
        %201 = vst [vmem:[%s195 + $0x10] sm:$0xff] %v200
      $region30: #{center_count_step.1} parent=24 // loop_footer
        %s193 = sadd.s32 1, %s189
      $region31: #{center_count_step.1} parent=24 // loop_footer_branch
        %188 = sbr.rel target = $region27
      $region32: #{center_count_step.1} parent=24 // loop_exit
        _
      %s203 = ssub.s32 32, 1
      loop: start=0, step=1, limit=1
      $region33: #{center_count_step.1} parent=24 // loop_pre_header
        _
      $region34: #{center_count_step.1} parent=24 // loop_header
        %s205 = sphi 0, %s209
        %p206 = scmp.ge.s32.totalorder %s205, 1
        %s210 = sphi %s186, %s186
        %s211 = sphi %s187, %s187
      $region35: #{center_count_step.1} parent=24 // loop_header_branch
        %208 = sbr.rel (%p206) target = $region39
      $region36: #{center_count_step.1} parent=24 // loop_body
        %v212 = vld [vmem:[%s210] sm:%s203]
        %213 = vst [vmem:[%s211] sm:%s203] %v212
      $region37: #{center_count_step.1} parent=24 // loop_footer
        %s209 = sadd.s32 1, %s205
      $region38: #{center_count_step.1} parent=24 // loop_footer_branch
        %204 = sbr.rel target = $region34
      $region39: #{center_count_step.1} parent=24 // loop_exit
        _
    $region25: #{center_count_step.1} parent=1 // pred_fallthru
      _
    // Predicated region
    $region40: #{center_count_step.1} parent=1 // pred_check
      _
    $region41: #{center_count_step.1} parent=1 // pred_check_branch
      %216 = sbr.rel (0) target = $region43
    $region42: #{center_count_step.1} parent=1 // pred_region
      %217 = vsyncadd [#allocation3], 464
    $region43: #{center_count_step.1} parent=1 // pred_fallthru
      _
    %s218 = smul.u32 29, 1
    %s219 = sshll.u32 %s218, 4
    %220 = dma.done [#allocation3], %s219
    %v221 = vld [vmem:[#allocation2] sm:$0xff]
    %v222 = vld [vmem:[#allocation2 + $0x8] sm:$0xff]
    %v223 = vld [vmem:[#allocation2 + $0x10] sm:$0xff]
    %v224 = vld [vmem:[#allocation2 + $0x18] sm:$0x1f]
    %v225 = vstv %s164
    %v226 = vmul.f32 %v225, %v221
    %v227 = vmul.f32 %v225, %v222
    %v228 = vmul.f32 %v225, %v223
    %v229 = vmul.f32 %v225, %v224
    %v230 = vld [vmem:[%s1] sm:$0xff]
    %v231 = vld [vmem:[%s1 + $0x8] sm:$0xff]
    %v232 = vld [vmem:[%s1 + $0x10] sm:$0xff]
    %v233 = vld [vmem:[%s1 + $0x18] sm:$0x1f]
    %v234 = vadd.f32 %v226, %v230
    %v235 = vadd.f32 %v227, %v231
    %v236 = vadd.f32 %v228, %v232
    %v237 = vadd.f32 %v229, %v233
    %v238 = vstv %s181
    %v239 = vmul.f32 %v234, %v238
    %v240 = vmul.f32 %v235, %v238
    %v241 = vmul.f32 %v236, %v238
    %v242 = vmul.f32 %v237, %v238
    %243 = vst [vmem:[#allocation2] sm:$0xff] %v239
    %244 = vst [vmem:[#allocation2 + $0x8] sm:$0xff] %v240
    %245 = vst [vmem:[#allocation2 + $0x10] sm:$0xff] %v241
    %246 = vst [vmem:[#allocation2 + $0x18] sm:$0x1f] %v242
    %s247 = scalar_lea.sflag [#allocation3], 1
    // Predicated region
    $region44: #{center_count_step.1} parent=1 // pred_check
      _
    $region45: #{center_count_step.1} parent=1 // pred_check_branch
      %249 = sbr.rel (0) target = $region47
    $region46: #{center_count_step.1} parent=1 // pred_region
      %s250 = scalar_lea.vmem [#allocation2], 24
      %s251 = scalar_lea.vmem %s183, 24
      loop: start=0, step=1, limit=1
      $region48: #{center_count_step.1} parent=46 // loop_pre_header
        _
      $region49: #{center_count_step.1} parent=46 // loop_header
        %s253 = sphi 0, %s257
        %p254 = scmp.ge.s32.totalorder %s253, 1
        %s258 = sphi [#allocation2], [#allocation2]
        %s259 = sphi %s183, %s183
      $region50: #{center_count_step.1} parent=46 // loop_header_branch
        %256 = sbr.rel (%p254) target = $region54
      $region51: #{center_count_step.1} parent=46 // loop_body
        %v260 = vld [vmem:[%s258] sm:$0xff]
        %261 = vst [vmem:[%s259] sm:$0xff] %v260
        %v262 = vld [vmem:[%s258 + $0x8] sm:$0xff]
        %263 = vst [vmem:[%s259 + $0x8] sm:$0xff] %v262
        %v264 = vld [vmem:[%s258 + $0x10] sm:$0xff]
        %265 = vst [vmem:[%s259 + $0x10] sm:$0xff] %v264
      $region52: #{center_count_step.1} parent=46 // loop_footer
        %s257 = sadd.s32 1, %s253
      $region53: #{center_count_step.1} parent=46 // loop_footer_branch
        %252 = sbr.rel target = $region49
      $region54: #{center_count_step.1} parent=46 // loop_exit
        _
      %s267 = ssub.s32 32, 1
      loop: start=0, step=1, limit=1
      $region55: #{center_count_step.1} parent=46 // loop_pre_header
        _
      $region56: #{center_count_step.1} parent=46 // loop_header
        %s269 = sphi 0, %s273
        %p270 = scmp.ge.s32.totalorder %s269, 1
        %s274 = sphi %s250, %s250
        %s275 = sphi %s251, %s251
      $region57: #{center_count_step.1} parent=46 // loop_header_branch
        %272 = sbr.rel (%p270) target = $region61
      $region58: #{center_count_step.1} parent=46 // loop_body
        %v276 = vld [vmem:[%s274] sm:%s267]
        %277 = vst [vmem:[%s275] sm:%s267] %v276
      $region59: #{center_count_step.1} parent=46 // loop_footer
        %s273 = sadd.s32 1, %s269
      $region60: #{center_count_step.1} parent=46 // loop_footer_branch
        %268 = sbr.rel target = $region56
      $region61: #{center_count_step.1} parent=46 // loop_exit
        _
    $region47: #{center_count_step.1} parent=1 // pred_fallthru
      _
    // Predicated region
    $region62: #{center_count_step.1} parent=1 // pred_check
      _
    $region63: #{center_count_step.1} parent=1 // pred_check_branch
      %280 = sbr.rel (0) target = $region65
    $region64: #{center_count_step.1} parent=1 // pred_region
      %281 = vsyncadd %s247, 464
    $region65: #{center_count_step.1} parent=1 // pred_fallthru
      _
    %s282 = sshll.u32 %s218, 4
    %283 = dma.done %s247, %s282
    %s284 = scalar_lea.smem [#allocation9], %s163
    %285 = sst [smem:[%s284]] %s165
    %s286 = sld [smem:[#allocation4 + $0x1]]
    %s287 = sld [smem:[#allocation9 + %s286]]
    %s288 = sadd.f32 %s287, 1.0
    %v289 = vstv %s288
    %v290 = vrcp.pop %v289
    %v291 = vmul.f32 %v289, %v290
    %v292 = vsub.f32 1.0, %v291
    %v293 = vmul.f32 %v290, %v292
    %v294 = vadd.f32 %v290, %v293
    %vm295 = vweird.f32 %v289
    %vm296 = vweird.f32 %v290
    %vm297 = vmor %vm295, %vm296
    %v298 = vsel %vm297, %v290, %v294
    %v299 = vand.u32 2147483647, %v289
    %vm300 = vcmp.eq.f32.partialorder %v299, 8.507059e+37
    %v301 = vand.u32 %v289, 2147483648
    %v302 = vor.u32 1.1754944e-38, %v301
    %v303 = vsel %vm300, %v302, %v298
    %s304 = vtos %v303
    %s305 = smul.u32 %s286, 32
    %s306 = scalar_lea.vmem %s4, %s305
    // Predicated region
    $region66: #{center_count_step.1} parent=1 // pred_check
      _
    $region67: #{center_count_step.1} parent=1 // pred_check_branch
      %308 = sbr.rel (0) target = $region69
    $region68: #{center_count_step.1} parent=1 // pred_region
      %s309 = scalar_lea.vmem %s306, 24
      %s310 = scalar_lea.vmem [#allocation2], 24
      loop: start=0, step=1, limit=1
      $region70: #{center_count_step.1} parent=68 // loop_pre_header
        _
      $region71: #{center_count_step.1} parent=68 // loop_header
        %s312 = sphi 0, %s316
        %p313 = scmp.ge.s32.totalorder %s312, 1
        %s317 = sphi %s306, %s306
        %s318 = sphi [#allocation2], [#allocation2]
      $region72: #{center_count_step.1} parent=68 // loop_header_branch
        %315 = sbr.rel (%p313) target = $region76
      $region73: #{center_count_step.1} parent=68 // loop_body
        %v319 = vld [vmem:[%s317] sm:$0xff]
        %320 = vst [vmem:[%s318] sm:$0xff] %v319
        %v321 = vld [vmem:[%s317 + $0x8] sm:$0xff]
        %322 = vst [vmem:[%s318 + $0x8] sm:$0xff] %v321
        %v323 = vld [vmem:[%s317 + $0x10] sm:$0xff]
        %324 = vst [vmem:[%s318 + $0x10] sm:$0xff] %v323
      $region74: #{center_count_step.1} parent=68 // loop_footer
        %s316 = sadd.s32 1, %s312
      $region75: #{center_count_step.1} parent=68 // loop_footer_branch
        %311 = sbr.rel target = $region71
      $region76: #{center_count_step.1} parent=68 // loop_exit
        _
      %s326 = ssub.s32 32, 1
      loop: start=0, step=1, limit=1
      $region77: #{center_count_step.1} parent=68 // loop_pre_header
        _
      $region78: #{center_count_step.1} parent=68 // loop_header
        %s328 = sphi 0, %s332
        %p329 = scmp.ge.s32.totalorder %s328, 1
        %s333 = sphi %s309, %s309
        %s334 = sphi %s310, %s310
      $region79: #{center_count_step.1} parent=68 // loop_header_branch
        %331 = sbr.rel (%p329) target = $region83
      $region80: #{center_count_step.1} parent=68 // loop_body
        %v335 = vld [vmem:[%s333] sm:%s326]
        %336 = vst [vmem:[%s334] sm:%s326] %v335
      $region81: #{center_count_step.1} parent=68 // loop_footer
        %s332 = sadd.s32 1, %s328
      $region82: #{center_count_step.1} parent=68 // loop_footer_branch
        %327 = sbr.rel target = $region78
      $region83: #{center_count_step.1} parent=68 // loop_exit
        _
    $region69: #{center_count_step.1} parent=1 // pred_fallthru
      _
    // Predicated region
    $region84: #{center_count_step.1} parent=1 // pred_check
      _
    $region85: #{center_count_step.1} parent=1 // pred_check_branch
      %339 = sbr.rel (0) target = $region87
    $region86: #{center_count_step.1} parent=1 // pred_region
      %340 = vsyncadd [#allocation3], 464
    $region87: #{center_count_step.1} parent=1 // pred_fallthru
      _
    %s341 = sshll.u32 %s218, 4
    %342 = dma.done [#allocation3], %s341
    %v343 = vld [vmem:[#allocation2] sm:$0xff]
    %v344 = vld [vmem:[#allocation2 + $0x8] sm:$0xff]
    %v345 = vld [vmem:[#allocation2 + $0x10] sm:$0xff]
    %v346 = vld [vmem:[#allocation2 + $0x18] sm:$0x1f]
    %v347 = vstv %s287
    %v348 = vmul.f32 %v347, %v343
    %v349 = vmul.f32 %v347, %v344
    %v350 = vmul.f32 %v347, %v345
    %v351 = vmul.f32 %v347, %v346
    %s352 = scalar_lea.vmem %s1, 32
    %v353 = vld [vmem:[%s352] sm:$0xff]
    %v354 = vld [vmem:[%s352 + $0x8] sm:$0xff]
    %v355 = vld [vmem:[%s352 + $0x10] sm:$0xff]
    %v356 = vld [vmem:[%s352 + $0x18] sm:$0x1f]
    %v357 = vadd.f32 %v348, %v353
    %v358 = vadd.f32 %v349, %v354
    %v359 = vadd.f32 %v350, %v355
    %v360 = vadd.f32 %v351, %v356
    %v361 = vstv %s304
    %v362 = vmul.f32 %v357, %v361
    %v363 = vmul.f32 %v358, %v361
    %v364 = vmul.f32 %v359, %v361
    %v365 = vmul.f32 %v360, %v361
    %366 = vst [vmem:[#allocation2] sm:$0xff] %v362
    %367 = vst [vmem:[#allocation2 + $0x8] sm:$0xff] %v363
    %368 = vst [vmem:[#allocation2 + $0x10] sm:$0xff] %v364
    %369 = vst [vmem:[#allocation2 + $0x18] sm:$0x1f] %v365
    // Predicated region
    $region88: #{center_count_step.1} parent=1 // pred_check
      _
    $region89: #{center_count_step.1} parent=1 // pred_check_branch
      %371 = sbr.rel (0) target = $region91
    $region90: #{center_count_step.1} parent=1 // pred_region
      %s372 = scalar_lea.vmem [#allocation2], 24
      %s373 = scalar_lea.vmem %s306, 24
      loop: start=0, step=1, limit=1
      $region92: #{center_count_step.1} parent=90 // loop_pre_header
        _
      $region93: #{center_count_step.1} parent=90 // loop_header
        %s375 = sphi 0, %s379
        %p376 = scmp.ge.s32.totalorder %s375, 1
        %s380 = sphi [#allocation2], [#allocation2]
        %s381 = sphi %s306, %s306
      $region94: #{center_count_step.1} parent=90 // loop_header_branch
        %378 = sbr.rel (%p376) target = $region98
      $region95: #{center_count_step.1} parent=90 // loop_body
        %v382 = vld [vmem:[%s380] sm:$0xff]
        %383 = vst [vmem:[%s381] sm:$0xff] %v382
        %v384 = vld [vmem:[%s380 + $0x8] sm:$0xff]
        %385 = vst [vmem:[%s381 + $0x8] sm:$0xff] %v384
        %v386 = vld [vmem:[%s380 + $0x10] sm:$0xff]
        %387 = vst [vmem:[%s381 + $0x10] sm:$0xff] %v386
      $region96: #{center_count_step.1} parent=90 // loop_footer
        %s379 = sadd.s32 1, %s375
      $region97: #{center_count_step.1} parent=90 // loop_footer_branch
        %374 = sbr.rel target = $region93
      $region98: #{center_count_step.1} parent=90 // loop_exit
        _
      %s389 = ssub.s32 32, 1
      loop: start=0, step=1, limit=1
      $region99: #{center_count_step.1} parent=90 // loop_pre_header
        _
      $region100: #{center_count_step.1} parent=90 // loop_header
        %s391 = sphi 0, %s395
        %p392 = scmp.ge.s32.totalorder %s391, 1
        %s396 = sphi %s372, %s372
        %s397 = sphi %s373, %s373
      $region101: #{center_count_step.1} parent=90 // loop_header_branch
        %394 = sbr.rel (%p392) target = $region105
      $region102: #{center_count_step.1} parent=90 // loop_body
        %v398 = vld [vmem:[%s396] sm:%s389]
        %399 = vst [vmem:[%s397] sm:%s389] %v398
      $region103: #{center_count_step.1} parent=90 // loop_footer
        %s395 = sadd.s32 1, %s391
      $region104: #{center_count_step.1} parent=90 // loop_footer_branch
        %390 = sbr.rel target = $region100
      $region105: #{center_count_step.1} parent=90 // loop_exit
        _
    $region91: #{center_count_step.1} parent=1 // pred_fallthru
      _
    // Predicated region
    $region106: #{center_count_step.1} parent=1 // pred_check
      _
    $region107: #{center_count_step.1} parent=1 // pred_check_branch
      %402 = sbr.rel (0) target = $region109
    $region108: #{center_count_step.1} parent=1 // pred_region
      %403 = vsyncadd %s247, 464
    $region109: #{center_count_step.1} parent=1 // pred_fallthru
      _
    %s404 = sshll.u32 %s218, 4
    %405 = dma.done %s247, %s404
    %s406 = scalar_lea.smem [#allocation9], %s286
    %407 = sst [smem:[%s406]] %s288
    %s408 = sld [smem:[#allocation4 + $0x2]]
    %s409 = sld [smem:[#allocation9 + %s408]]
    %s410 = sadd.f32 %s409, 1.0
    %v411 = vstv %s410
    %v412 = vrcp.pop %v411
    %v413 = vmul.f32 %v411, %v412
    %v414 = vsub.f32 1.0, %v413
    %v415 = vmul.f32 %v412, %v414
    %v416 = vadd.f32 %v412, %v415
    %vm417 = vweird.f32 %v411
    %vm418 = vweird.f32 %v412
    %vm419 = vmor %vm417, %vm418
    %v420 = vsel %vm419, %v412, %v416
    %v421 = vand.u32 2147483647, %v411
    %vm422 = vcmp.eq.f32.partialorder %v421, 8.507059e+37
    %v423 = vand.u32 %v411, 2147483648
    %v424 = vor.u32 1.1754944e-38, %v423
    %v425 = vsel %vm422, %v424, %v420
    %s426 = vtos %v425
    %s427 = smul.u32 %s408, 32
    %s428 = scalar_lea.vmem %s4, %s427
    // Predicated region
    $region110: #{center_count_step.1} parent=1 // pred_check
      _
    $region111: #{center_count_step.1} parent=1 // pred_check_branch
      %430 = sbr.rel (0) target = $region113
    $region112: #{center_count_step.1} parent=1 // pred_region
      %s431 = scalar_lea.vmem %s428, 24
      %s432 = scalar_lea.vmem [#allocation2], 24
      loop: start=0, step=1, limit=1
      $region114: #{center_count_step.1} parent=112 // loop_pre_header
        _
      $region115: #{center_count_step.1} parent=112 // loop_header
        %s434 = sphi 0, %s438
        %p435 = scmp.ge.s32.totalorder %s434, 1
        %s439 = sphi %s428, %s428
        %s440 = sphi [#allocation2], [#allocation2]
      $region116: #{center_count_step.1} parent=112 // loop_header_branch
        %437 = sbr.rel (%p435) target = $region120
      $region117: #{center_count_step.1} parent=112 // loop_body
        %v441 = vld [vmem:[%s439] sm:$0xff]
        %442 = vst [vmem:[%s440] sm:$0xff] %v441
        %v443 = vld [vmem:[%s439 + $0x8] sm:$0xff]
        %444 = vst [vmem:[%s440 + $0x8] sm:$0xff] %v443
        %v445 = vld [vmem:[%s439 + $0x10] sm:$0xff]
        %446 = vst [vmem:[%s440 + $0x10] sm:$0xff] %v445
      $region118: #{center_count_step.1} parent=112 // loop_footer
        %s438 = sadd.s32 1, %s434
      $region119: #{center_count_step.1} parent=112 // loop_footer_branch
        %433 = sbr.rel target = $region115
      $region120: #{center_count_step.1} parent=112 // loop_exit
        _
      %s448 = ssub.s32 32, 1
      loop: start=0, step=1, limit=1
      $region121: #{center_count_step.1} parent=112 // loop_pre_header
        _
      $region122: #{center_count_step.1} parent=112 // loop_header
        %s450 = sphi 0, %s454
        %p451 = scmp.ge.s32.totalorder %s450, 1
        %s455 = sphi %s431, %s431
        %s456 = sphi %s432, %s432
      $region123: #{center_count_step.1} parent=112 // loop_header_branch
        %453 = sbr.rel (%p451) target = $region127
      $region124: #{center_count_step.1} parent=112 // loop_body
        %v457 = vld [vmem:[%s455] sm:%s448]
        %458 = vst [vmem:[%s456] sm:%s448] %v457
      $region125: #{center_count_step.1} parent=112 // loop_footer
        %s454 = sadd.s32 1, %s450
      $region126: #{center_count_step.1} parent=112 // loop_footer_branch
        %449 = sbr.rel target = $region122
      $region127: #{center_count_step.1} parent=112 // loop_exit
        _
    $region113: #{center_count_step.1} parent=1 // pred_fallthru
      _
    // Predicated region
    $region128: #{center_count_step.1} parent=1 // pred_check
      _
    $region129: #{center_count_step.1} parent=1 // pred_check_branch
      %461 = sbr.rel (0) target = $region131
    $region130: #{center_count_step.1} parent=1 // pred_region
      %462 = vsyncadd [#allocation3], 464
    $region131: #{center_count_step.1} parent=1 // pred_fallthru
      _
    %s463 = sshll.u32 %s218, 4
    %464 = dma.done [#allocation3], %s463
    %v465 = vld [vmem:[#allocation2] sm:$0xff]
    %v466 = vld [vmem:[#allocation2 + $0x8] sm:$0xff]
    %v467 = vld [vmem:[#allocation2 + $0x10] sm:$0xff]
    %v468 = vld [vmem:[#allocation2 + $0x18] sm:$0x1f]
    %v469 = vstv %s409
    %v470 = vmul.f32 %v469, %v465
    %v471 = vmul.f32 %v469, %v466
    %v472 = vmul.f32 %v469, %v467
    %v473 = vmul.f32 %v469, %v468
    %s474 = scalar_lea.vmem %s1, 64
    %v475 = vld [vmem:[%s474] sm:$0xff]
    %v476 = vld [vmem:[%s474 + $0x8] sm:$0xff]
    %v477 = vld [vmem:[%s474 + $0x10] sm:$0xff]
    %v478 = vld [vmem:[%s474 + $0x18] sm:$0x1f]
    %v479 = vadd.f32 %v470, %v475
    %v480 = vadd.f32 %v471, %v476
    %v481 = vadd.f32 %v472, %v477
    %v482 = vadd.f32 %v473, %v478
    %v483 = vstv %s426
    %v484 = vmul.f32 %v479, %v483
    %v485 = vmul.f32 %v480, %v483
    %v486 = vmul.f32 %v481, %v483
    %v487 = vmul.f32 %v482, %v483
    %488 = vst [vmem:[#allocation2] sm:$0xff] %v484
    %489 = vst [vmem:[#allocation2 + $0x8] sm:$0xff] %v485
    %490 = vst [vmem:[#allocation2 + $0x10] sm:$0xff] %v486
    %491 = vst [vmem:[#allocation2 + $0x18] sm:$0x1f] %v487
    // Predicated region
    $region132: #{center_count_step.1} parent=1 // pred_check
      _
    $region133: #{center_count_step.1} parent=1 // pred_check_branch
      %493 = sbr.rel (0) target = $region135
    $region134: #{center_count_step.1} parent=1 // pred_region
      %s494 = scalar_lea.vmem [#allocation2], 24
      %s495 = scalar_lea.vmem %s428, 24
      loop: start=0, step=1, limit=1
      $region136: #{center_count_step.1} parent=134 // loop_pre_header
        _
      $region137: #{center_count_step.1} parent=134 // loop_header
        %s497 = sphi 0, %s501
        %p498 = scmp.ge.s32.totalorder %s497, 1
        %s502 = sphi [#allocation2], [#allocation2]
        %s503 = sphi %s428, %s428
      $region138: #{center_count_step.1} parent=134 // loop_header_branch
        %500 = sbr.rel (%p498) target = $region142
      $region139: #{center_count_step.1} parent=134 // loop_body
        %v504 = vld [vmem:[%s502] sm:$0xff]
        %505 = vst [vmem:[%s503] sm:$0xff] %v504
        %v506 = vld [vmem:[%s502 + $0x8] sm:$0xff]
        %507 = vst [vmem:[%s503 + $0x8] sm:$0xff] %v506
        %v508 = vld [vmem:[%s502 + $0x10] sm:$0xff]
        %509 = vst [vmem:[%s503 + $0x10] sm:$0xff] %v508
      $region140: #{center_count_step.1} parent=134 // loop_footer
        %s501 = sadd.s32 1, %s497
      $region141: #{center_count_step.1} parent=134 // loop_footer_branch
        %496 = sbr.rel target = $region137
      $region142: #{center_count_step.1} parent=134 // loop_exit
        _
      %s511 = ssub.s32 32, 1
      loop: start=0, step=1, limit=1
      $region143: #{center_count_step.1} parent=134 // loop_pre_header
        _
      $region144: #{center_count_step.1} parent=134 // loop_header
        %s513 = sphi 0, %s517
        %p514 = scmp.ge.s32.totalorder %s513, 1
        %s518 = sphi %s494, %s494
        %s519 = sphi %s495, %s495
      $region145: #{center_count_step.1} parent=134 // loop_header_branch
        %516 = sbr.rel (%p514) target = $region149
      $region146: #{center_count_step.1} parent=134 // loop_body
        %v520 = vld [vmem:[%s518] sm:%s511]
        %521 = vst [vmem:[%s519] sm:%s511] %v520
      $region147: #{center_count_step.1} parent=134 // loop_footer
        %s517 = sadd.s32 1, %s513
      $region148: #{center_count_step.1} parent=134 // loop_footer_branch
        %512 = sbr.rel target = $region144
      $region149: #{center_count_step.1} parent=134 // loop_exit
        _
    $region135: #{center_count_step.1} parent=1 // pred_fallthru
      _
    // Predicated region
    $region150: #{center_count_step.1} parent=1 // pred_check
      _
    $region151: #{center_count_step.1} parent=1 // pred_check_branch
      %524 = sbr.rel (0) target = $region153
    $region152: #{center_count_step.1} parent=1 // pred_region
      %525 = vsyncadd %s247, 464
    $region153: #{center_count_step.1} parent=1 // pred_fallthru
      _
    %s526 = sshll.u32 %s218, 4
    %527 = dma.done %s247, %s526
    %s528 = scalar_lea.smem [#allocation9], %s408
    %529 = sst [smem:[%s528]] %s410
    %s530 = sld [smem:[#allocation4 + $0x3]]
    %s531 = sld [smem:[#allocation9 + %s530]]
    %s532 = sadd.f32 %s531, 1.0
    %v533 = vstv %s532
    %v534 = vrcp.pop %v533
    %v535 = vmul.f32 %v533, %v534
    %v536 = vsub.f32 1.0, %v535
    %v537 = vmul.f32 %v534, %v536
    %v538 = vadd.f32 %v534, %v537
    %vm539 = vweird.f32 %v533
    %vm540 = vweird.f32 %v534
    %vm541 = vmor %vm539, %vm540
    %v542 = vsel %vm541, %v534, %v538
    %v543 = vand.u32 2147483647, %v533
    %vm544 = vcmp.eq.f32.partialorder %v543, 8.507059e+37
    %v545 = vand.u32 %v533, 2147483648
    %v546 = vor.u32 1.1754944e-38, %v545
    %v547 = vsel %vm544, %v546, %v542
    %s548 = vtos %v547
    %s549 = smul.u32 %s530, 32
    %s550 = scalar_lea.vmem %s4, %s549
    // Predicated region
    $region154: #{center_count_step.1} parent=1 // pred_check
      _
    $region155: #{center_count_step.1} parent=1 // pred_check_branch
      %552 = sbr.rel (0) target = $region157
    $region156: #{center_count_step.1} parent=1 // pred_region
      %s553 = scalar_lea.vmem %s550, 24
      %s554 = scalar_lea.vmem [#allocation2], 24
      loop: start=0, step=1, limit=1
      $region158: #{center_count_step.1} parent=156 // loop_pre_header
        _
      $region159: #{center_count_step.1} parent=156 // loop_header
        %s556 = sphi 0, %s560
        %p557 = scmp.ge.s32.totalorder %s556, 1
        %s561 = sphi %s550, %s550
        %s562 = sphi [#allocation2], [#allocation2]
      $region160: #{center_count_step.1} parent=156 // loop_header_branch
        %559 = sbr.rel (%p557) target = $region164
      $region161: #{center_count_step.1} parent=156 // loop_body
        %v563 = vld [vmem:[%s561] sm:$0xff]
        %564 = vst [vmem:[%s562] sm:$0xff] %v563
        %v565 = vld [vmem:[%s561 + $0x8] sm:$0xff]
        %566 = vst [vmem:[%s562 + $0x8] sm:$0xff] %v565
        %v567 = vld [vmem:[%s561 + $0x10] sm:$0xff]
        %568 = vst [vmem:[%s562 + $0x10] sm:$0xff] %v567
      $region162: #{center_count_step.1} parent=156 // loop_footer
        %s560 = sadd.s32 1, %s556
      $region163: #{center_count_step.1} parent=156 // loop_footer_branch
        %555 = sbr.rel target = $region159
      $region164: #{center_count_step.1} parent=156 // loop_exit
        _
      %s570 = ssub.s32 32, 1
      loop: start=0, step=1, limit=1
      $region165: #{center_count_step.1} parent=156 // loop_pre_header
        _
      $region166: #{center_count_step.1} parent=156 // loop_header
        %s572 = sphi 0, %s576
        %p573 = scmp.ge.s32.totalorder %s572, 1
        %s577 = sphi %s553, %s553
        %s578 = sphi %s554, %s554
      $region167: #{center_count_step.1} parent=156 // loop_header_branch
        %575 = sbr.rel (%p573) target = $region171
      $region168: #{center_count_step.1} parent=156 // loop_body
        %v579 = vld [vmem:[%s577] sm:%s570]
        %580 = vst [vmem:[%s578] sm:%s570] %v579
      $region169: #{center_count_step.1} parent=156 // loop_footer
        %s576 = sadd.s32 1, %s572
      $region170: #{center_count_step.1} parent=156 // loop_footer_branch
        %571 = sbr.rel target = $region166
      $region171: #{center_count_step.1} parent=156 // loop_exit
        _
    $region157: #{center_count_step.1} parent=1 // pred_fallthru
      _
    // Predicated region
    $region172: #{center_count_step.1} parent=1 // pred_check
      _
    $region173: #{center_count_step.1} parent=1 // pred_check_branch
      %583 = sbr.rel (0) target = $region175
    $region174: #{center_count_step.1} parent=1 // pred_region
      %584 = vsyncadd [#allocation3], 464
    $region175: #{center_count_step.1} parent=1 // pred_fallthru
      _
    %s585 = sshll.u32 %s218, 4
    %586 = dma.done [#allocation3], %s585
    %v587 = vld [vmem:[#allocation2] sm:$0xff]
    %v588 = vld [vmem:[#allocation2 + $0x8] sm:$0xff]
    %v589 = vld [vmem:[#allocation2 + $0x10] sm:$0xff]
    %v590 = vld [vmem:[#allocation2 + $0x18] sm:$0x1f]
    %v591 = vstv %s531
    %v592 = vmul.f32 %v591, %v587
    %v593 = vmul.f32 %v591, %v588
    %v594 = vmul.f32 %v591, %v589
    %v595 = vmul.f32 %v591, %v590
    %s596 = scalar_lea.vmem %s1, 96
    %v597 = vld [vmem:[%s596] sm:$0xff]
    %v598 = vld [vmem:[%s596 + $0x8] sm:$0xff]
    %v599 = vld [vmem:[%s596 + $0x10] sm:$0xff]
    %v600 = vld [vmem:[%s596 + $0x18] sm:$0x1f]
    %v601 = vadd.f32 %v592, %v597
    %v602 = vadd.f32 %v593, %v598
    %v603 = vadd.f32 %v594, %v599
    %v604 = vadd.f32 %v595, %v600
    %v605 = vstv %s548
    %v606 = vmul.f32 %v601, %v605
    %v607 = vmul.f32 %v602, %v605
    %v608 = vmul.f32 %v603, %v605
    %v609 = vmul.f32 %v604, %v605
    %610 = vst [vmem:[#allocation2] sm:$0xff] %v606
    %611 = vst [vmem:[#allocation2 + $0x8] sm:$0xff] %v607
    %612 = vst [vmem:[#allocation2 + $0x10] sm:$0xff] %v608
    %613 = vst [vmem:[#allocation2 + $0x18] sm:$0x1f] %v609
    // Predicated region
    $region176: #{center_count_step.1} parent=1 // pred_check
      _
    $region177: #{center_count_step.1} parent=1 // pred_check_branch
      %615 = sbr.rel (0) target = $region179
    $region178: #{center_count_step.1} parent=1 // pred_region
      %s616 = scalar_lea.vmem [#allocation2], 24
      %s617 = scalar_lea.vmem %s550, 24
      loop: start=0, step=1, limit=1
      $region180: #{center_count_step.1} parent=178 // loop_pre_header
        _
      $region181: #{center_count_step.1} parent=178 // loop_header
        %s619 = sphi 0, %s623
        %p620 = scmp.ge.s32.totalorder %s619, 1
        %s624 = sphi [#allocation2], [#allocation2]
        %s625 = sphi %s550, %s550
      $region182: #{center_count_step.1} parent=178 // loop_header_branch
        %622 = sbr.rel (%p620) target = $region186
      $region183: #{center_count_step.1} parent=178 // loop_body
        %v626 = vld [vmem:[%s624] sm:$0xff]
        %627 = vst [vmem:[%s625] sm:$0xff] %v626
        %v628 = vld [vmem:[%s624 + $0x8] sm:$0xff]
        %629 = vst [vmem:[%s625 + $0x8] sm:$0xff] %v628
        %v630 = vld [vmem:[%s624 + $0x10] sm:$0xff]
        %631 = vst [vmem:[%s625 + $0x10] sm:$0xff] %v630
      $region184: #{center_count_step.1} parent=178 // loop_footer
        %s623 = sadd.s32 1, %s619
      $region185: #{center_count_step.1} parent=178 // loop_footer_branch
        %618 = sbr.rel target = $region181
      $region186: #{center_count_step.1} parent=178 // loop_exit
        _
      %s633 = ssub.s32 32, 1
      loop: start=0, step=1, limit=1
      $region187: #{center_count_step.1} parent=178 // loop_pre_header
        _
      $region188: #{center_count_step.1} parent=178 // loop_header
        %s635 = sphi 0, %s639
        %p636 = scmp.ge.s32.totalorder %s635, 1
        %s640 = sphi %s616, %s616
        %s641 = sphi %s617, %s617
      $region189: #{center_count_step.1} parent=178 // loop_header_branch
        %638 = sbr.rel (%p636) target = $region193
      $region190: #{center_count_step.1} parent=178 // loop_body
        %v642 = vld [vmem:[%s640] sm:%s633]
        %643 = vst [vmem:[%s641] sm:%s633] %v642
      $region191: #{center_count_step.1} parent=178 // loop_footer
        %s639 = sadd.s32 1, %s635
      $region192: #{center_count_step.1} parent=178 // loop_footer_branch
        %634 = sbr.rel target = $region188
      $region193: #{center_count_step.1} parent=178 // loop_exit
        _
    $region179: #{center_count_step.1} parent=1 // pred_fallthru
      _
    // Predicated region
    $region194: #{center_count_step.1} parent=1 // pred_check
      _
    $region195: #{center_count_step.1} parent=1 // pred_check_branch
      %646 = sbr.rel (0) target = $region197
    $region196: #{center_count_step.1} parent=1 // pred_region
      %647 = vsyncadd %s247, 464
    $region197: #{center_count_step.1} parent=1 // pred_fallthru
      _
    %s648 = sshll.u32 %s218, 4
    %649 = dma.done %s247, %s648
    %s650 = scalar_lea.smem [#allocation9], %s530
    %651 = sst [smem:[%s650]] %s532
    %s652 = sld [smem:[#allocation4 + $0x4]]
    %s653 = sld [smem:[#allocation9 + %s652]]
    %s654 = sadd.f32 %s653, 1.0
    %v655 = vstv %s654
    %v656 = vrcp.pop %v655
    %v657 = vmul.f32 %v655, %v656
    %v658 = vsub.f32 1.0, %v657
    %v659 = vmul.f32 %v656, %v658
    %v660 = vadd.f32 %v656, %v659
    %vm661 = vweird.f32 %v655
    %vm662 = vweird.f32 %v656
    %vm663 = vmor %vm661, %vm662
    %v664 = vsel %vm663, %v656, %v660
    %v665 = vand.u32 2147483647, %v655
    %vm666 = vcmp.eq.f32.partialorder %v665, 8.507059e+37
    %v667 = vand.u32 %v655, 2147483648
    %v668 = vor.u32 1.1754944e-38, %v667
    %v669 = vsel %vm666, %v668, %v664
    %s670 = vtos %v669
    %s671 = smul.u32 %s652, 32
    %s672 = scalar_lea.vmem %s4, %s671
    // Predicated region
    $region198: #{center_count_step.1} parent=1 // pred_check
      _
    $region199: #{center_count_step.1} parent=1 // pred_check_branch
      %674 = sbr.rel (0) target = $region201
    $region200: #{center_count_step.1} parent=1 // pred_region
      %s675 = scalar_lea.vmem %s672, 24
      %s676 = scalar_lea.vmem [#allocation2], 24
      loop: start=0, step=1, limit=1
      $region202: #{center_count_step.1} parent=200 // loop_pre_header
        _
      $region203: #{center_count_step.1} parent=200 // loop_header
        %s678 = sphi 0, %s682
        %p679 = scmp.ge.s32.totalorder %s678, 1
        %s683 = sphi %s672, %s672
        %s684 = sphi [#allocation2], [#allocation2]
      $region204: #{center_count_step.1} parent=200 // loop_header_branch
        %681 = sbr.rel (%p679) target = $region208
      $region205: #{center_count_step.1} parent=200 // loop_body
        %v685 = vld [vmem:[%s683] sm:$0xff]
        %686 = vst [vmem:[%s684] sm:$0xff] %v685
        %v687 = vld [vmem:[%s683 + $0x8] sm:$0xff]
        %688 = vst [vmem:[%s684 + $0x8] sm:$0xff] %v687
        %v689 = vld [vmem:[%s683 + $0x10] sm:$0xff]
        %690 = vst [vmem:[%s684 + $0x10] sm:$0xff] %v689
      $region206: #{center_count_step.1} parent=200 // loop_footer
        %s682 = sadd.s32 1, %s678
      $region207: #{center_count_step.1} parent=200 // loop_footer_branch
        %677 = sbr.rel target = $region203
      $region208: #{center_count_step.1} parent=200 // loop_exit
        _
      %s692 = ssub.s32 32, 1
      loop: start=0, step=1, limit=1
      $region209: #{center_count_step.1} parent=200 // loop_pre_header
        _
      $region210: #{center_count_step.1} parent=200 // loop_header
        %s694 = sphi 0, %s698
        %p695 = scmp.ge.s32.totalorder %s694, 1
        %s699 = sphi %s675, %s675
        %s700 = sphi %s676, %s676
      $region211: #{center_count_step.1} parent=200 // loop_header_branch
        %697 = sbr.rel (%p695) target = $region215
      $region212: #{center_count_step.1} parent=200 // loop_body
        %v701 = vld [vmem:[%s699] sm:%s692]
        %702 = vst [vmem:[%s700] sm:%s692] %v701
      $region213: #{center_count_step.1} parent=200 // loop_footer
        %s698 = sadd.s32 1, %s694
      $region214: #{center_count_step.1} parent=200 // loop_footer_branch
        %693 = sbr.rel target = $region210
      $region215: #{center_count_step.1} parent=200 // loop_exit
        _
    $region201: #{center_count_step.1} parent=1 // pred_fallthru
      _
    // Predicated region
    $region216: #{center_count_step.1} parent=1 // pred_check
      _
    $region217: #{center_count_step.1} parent=1 // pred_check_branch
      %705 = sbr.rel (0) target = $region219
    $region218: #{center_count_step.1} parent=1 // pred_region
      %706 = vsyncadd [#allocation3], 464
    $region219: #{center_count_step.1} parent=1 // pred_fallthru
      _
    %s707 = sshll.u32 %s218, 4
    %708 = dma.done [#allocation3], %s707
    %v709 = vld [vmem:[#allocation2] sm:$0xff]
    %v710 = vld [vmem:[#allocation2 + $0x8] sm:$0xff]
    %v711 = vld [vmem:[#allocation2 + $0x10] sm:$0xff]
    %v712 = vld [vmem:[#allocation2 + $0x18] sm:$0x1f]
    %v713 = vstv %s653
    %v714 = vmul.f32 %v713, %v709
    %v715 = vmul.f32 %v713, %v710
    %v716 = vmul.f32 %v713, %v711
    %v717 = vmul.f32 %v713, %v712
    %s718 = scalar_lea.vmem %s1, 128
    %v719 = vld [vmem:[%s718] sm:$0xff]
    %v720 = vld [vmem:[%s718 + $0x8] sm:$0xff]
    %v721 = vld [vmem:[%s718 + $0x10] sm:$0xff]
    %v722 = vld [vmem:[%s718 + $0x18] sm:$0x1f]
    %v723 = vadd.f32 %v714, %v719
    %v724 = vadd.f32 %v715, %v720
    %v725 = vadd.f32 %v716, %v721
    %v726 = vadd.f32 %v717, %v722
    %v727 = vstv %s670
    %v728 = vmul.f32 %v723, %v727
    %v729 = vmul.f32 %v724, %v727
    %v730 = vmul.f32 %v725, %v727
    %v731 = vmul.f32 %v726, %v727
    %732 = vst [vmem:[#allocation2] sm:$0xff] %v728
    %733 = vst [vmem:[#allocation2 + $0x8] sm:$0xff] %v729
    %734 = vst [vmem:[#allocation2 + $0x10] sm:$0xff] %v730
    %735 = vst [vmem:[#allocation2 + $0x18] sm:$0x1f] %v731
    // Predicated region
    $region220: #{center_count_step.1} parent=1 // pred_check
      _
    $region221: #{center_count_step.1} parent=1 // pred_check_branch
      %737 = sbr.rel (0) target = $region223
    $region222: #{center_count_step.1} parent=1 // pred_region
      %s738 = scalar_lea.vmem [#allocation2], 24
      %s739 = scalar_lea.vmem %s672, 24
      loop: start=0, step=1, limit=1
      $region224: #{center_count_step.1} parent=222 // loop_pre_header
        _
      $region225: #{center_count_step.1} parent=222 // loop_header
        %s741 = sphi 0, %s745
        %p742 = scmp.ge.s32.totalorder %s741, 1
        %s746 = sphi [#allocation2], [#allocation2]
        %s747 = sphi %s672, %s672
      $region226: #{center_count_step.1} parent=222 // loop_header_branch
        %744 = sbr.rel (%p742) target = $region230
      $region227: #{center_count_step.1} parent=222 // loop_body
        %v748 = vld [vmem:[%s746] sm:$0xff]
        %749 = vst [vmem:[%s747] sm:$0xff] %v748
        %v750 = vld [vmem:[%s746 + $0x8] sm:$0xff]
        %751 = vst [vmem:[%s747 + $0x8] sm:$0xff] %v750
        %v752 = vld [vmem:[%s746 + $0x10] sm:$0xff]
        %753 = vst [vmem:[%s747 + $0x10] sm:$0xff] %v752
      $region228: #{center_count_step.1} parent=222 // loop_footer
        %s745 = sadd.s32 1, %s741
      $region229: #{center_count_step.1} parent=222 // loop_footer_branch
        %740 = sbr.rel target = $region225
      $region230: #{center_count_step.1} parent=222 // loop_exit
        _
      %s755 = ssub.s32 32, 1
      loop: start=0, step=1, limit=1
      $region231: #{center_count_step.1} parent=222 // loop_pre_header
        _
      $region232: #{center_count_step.1} parent=222 // loop_header
        %s757 = sphi 0, %s761
        %p758 = scmp.ge.s32.totalorder %s757, 1
        %s762 = sphi %s738, %s738
        %s763 = sphi %s739, %s739
      $region233: #{center_count_step.1} parent=222 // loop_header_branch
        %760 = sbr.rel (%p758) target = $region237
      $region234: #{center_count_step.1} parent=222 // loop_body
        %v764 = vld [vmem:[%s762] sm:%s755]
        %765 = vst [vmem:[%s763] sm:%s755] %v764
      $region235: #{center_count_step.1} parent=222 // loop_footer
        %s761 = sadd.s32 1, %s757
      $region236: #{center_count_step.1} parent=222 // loop_footer_branch
        %756 = sbr.rel target = $region232
      $region237: #{center_count_step.1} parent=222 // loop_exit
        _
    $region223: #{center_count_step.1} parent=1 // pred_fallthru
      _
    // Predicated region
    $region238: #{center_count_step.1} parent=1 // pred_check
      _
    $region239: #{center_count_step.1} parent=1 // pred_check_branch
      %768 = sbr.rel (0) target = $region241
    $region240: #{center_count_step.1} parent=1 // pred_region
      %769 = vsyncadd %s247, 464
    $region241: #{center_count_step.1} parent=1 // pred_fallthru
      _
    %s770 = sshll.u32 %s218, 4
    %771 = dma.done %s247, %s770
    %s772 = scalar_lea.smem [#allocation9], %s652
    %773 = sst [smem:[%s772]] %s654
    %s774 = sld [smem:[#allocation4 + $0x5]]
    %s775 = sld [smem:[#allocation9 + %s774]]
    %s776 = sadd.f32 %s775, 1.0
    %v777 = vstv %s776
    %v778 = vrcp.pop %v777
    %v779 = vmul.f32 %v777, %v778
    %v780 = vsub.f32 1.0, %v779
    %v781 = vmul.f32 %v778, %v780
    %v782 = vadd.f32 %v778, %v781
    %vm783 = vweird.f32 %v777
    %vm784 = vweird.f32 %v778
    %vm785 = vmor %vm783, %vm784
    %v786 = vsel %vm785, %v778, %v782
    %v787 = vand.u32 2147483647, %v777
    %vm788 = vcmp.eq.f32.partialorder %v787, 8.507059e+37
    %v789 = vand.u32 %v777, 2147483648
    %v790 = vor.u32 1.1754944e-38, %v789
    %v791 = vsel %vm788, %v790, %v786
    %s792 = vtos %v791
    %s793 = smul.u32 %s774, 32
    %s794 = scalar_lea.vmem %s4, %s793
    // Predicated region
    $region242: #{center_count_step.1} parent=1 // pred_check
      _
    $region243: #{center_count_step.1} parent=1 // pred_check_branch
      %796 = sbr.rel (0) target = $region245
    $region244: #{center_count_step.1} parent=1 // pred_region
      %s797 = scalar_lea.vmem %s794, 24
      %s798 = scalar_lea.vmem [#allocation2], 24
      loop: start=0, step=1, limit=1
      $region246: #{center_count_step.1} parent=244 // loop_pre_header
        _
      $region247: #{center_count_step.1} parent=244 // loop_header
        %s800 = sphi 0, %s804
        %p801 = scmp.ge.s32.totalorder %s800, 1
        %s805 = sphi %s794, %s794
        %s806 = sphi [#allocation2], [#allocation2]
      $region248: #{center_count_step.1} parent=244 // loop_header_branch
        %803 = sbr.rel (%p801) target = $region252
      $region249: #{center_count_step.1} parent=244 // loop_body
        %v807 = vld [vmem:[%s805] sm:$0xff]
        %808 = vst [vmem:[%s806] sm:$0xff] %v807
        %v809 = vld [vmem:[%s805 + $0x8] sm:$0xff]
        %810 = vst [vmem:[%s806 + $0x8] sm:$0xff] %v809
        %v811 = vld [vmem:[%s805 + $0x10] sm:$0xff]
        %812 = vst [vmem:[%s806 + $0x10] sm:$0xff] %v811
      $region250: #{center_count_step.1} parent=244 // loop_footer
        %s804 = sadd.s32 1, %s800
      $region251: #{center_count_step.1} parent=244 // loop_footer_branch
        %799 = sbr.rel target = $region247
      $region252: #{center_count_step.1} parent=244 // loop_exit
        _
      %s814 = ssub.s32 32, 1
      loop: start=0, step=1, limit=1
      $region253: #{center_count_step.1} parent=244 // loop_pre_header
        _
      $region254: #{center_count_step.1} parent=244 // loop_header
        %s816 = sphi 0, %s820
        %p817 = scmp.ge.s32.totalorder %s816, 1
        %s821 = sphi %s797, %s797
        %s822 = sphi %s798, %s798
      $region255: #{center_count_step.1} parent=244 // loop_header_branch
        %819 = sbr.rel (%p817) target = $region259
      $region256: #{center_count_step.1} parent=244 // loop_body
        %v823 = vld [vmem:[%s821] sm:%s814]
        %824 = vst [vmem:[%s822] sm:%s814] %v823
      $region257: #{center_count_step.1} parent=244 // loop_footer
        %s820 = sadd.s32 1, %s816
      $region258: #{center_count_step.1} parent=244 // loop_footer_branch
        %815 = sbr.rel target = $region254
      $region259: #{center_count_step.1} parent=244 // loop_exit
        _
    $region245: #{center_count_step.1} parent=1 // pred_fallthru
      _
    // Predicated region
    $region260: #{center_count_step.1} parent=1 // pred_check
      _
    $region261: #{center_count_step.1} parent=1 // pred_check_branch
      %827 = sbr.rel (0) target = $region263
    $region262: #{center_count_step.1} parent=1 // pred_region
      %828 = vsyncadd [#allocation3], 464
    $region263: #{center_count_step.1} parent=1 // pred_fallthru
      _
    %s829 = sshll.u32 %s218, 4
    %830 = dma.done [#allocation3], %s829
    %v831 = vld [vmem:[#allocation2] sm:$0xff]
    %v832 = vld [vmem:[#allocation2 + $0x8] sm:$0xff]
    %v833 = vld [vmem:[#allocation2 + $0x10] sm:$0xff]
    %v834 = vld [vmem:[#allocation2 + $0x18] sm:$0x1f]
    %v835 = vstv %s775
    %v836 = vmul.f32 %v835, %v831
    %v837 = vmul.f32 %v835, %v832
    %v838 = vmul.f32 %v835, %v833
    %v839 = vmul.f32 %v835, %v834
    %s840 = scalar_lea.vmem %s1, 160
    %v841 = vld [vmem:[%s840] sm:$0xff]
    %v842 = vld [vmem:[%s840 + $0x8] sm:$0xff]
    %v843 = vld [vmem:[%s840 + $0x10] sm:$0xff]
    %v844 = vld [vmem:[%s840 + $0x18] sm:$0x1f]
    %v845 = vadd.f32 %v836, %v841
    %v846 = vadd.f32 %v837, %v842
    %v847 = vadd.f32 %v838, %v843
    %v848 = vadd.f32 %v839, %v844
    %v849 = vstv %s792
    %v850 = vmul.f32 %v845, %v849
    %v851 = vmul.f32 %v846, %v849
    %v852 = vmul.f32 %v847, %v849
    %v853 = vmul.f32 %v848, %v849
    %854 = vst [vmem:[#allocation2] sm:$0xff] %v850
    %855 = vst [vmem:[#allocation2 + $0x8] sm:$0xff] %v851
    %856 = vst [vmem:[#allocation2 + $0x10] sm:$0xff] %v852
    %857 = vst [vmem:[#allocation2 + $0x18] sm:$0x1f] %v853
    // Predicated region
    $region264: #{center_count_step.1} parent=1 // pred_check
      _
    $region265: #{center_count_step.1} parent=1 // pred_check_branch
      %859 = sbr.rel (0) target = $region267
    $region266: #{center_count_step.1} parent=1 // pred_region
      %s860 = scalar_lea.vmem [#allocation2], 24
      %s861 = scalar_lea.vmem %s794, 24
      loop: start=0, step=1, limit=1
      $region268: #{center_count_step.1} parent=266 // loop_pre_header
        _
      $region269: #{center_count_step.1} parent=266 // loop_header
        %s863 = sphi 0, %s867
        %p864 = scmp.ge.s32.totalorder %s863, 1
        %s868 = sphi [#allocation2], [#allocation2]
        %s869 = sphi %s794, %s794
      $region270: #{center_count_step.1} parent=266 // loop_header_branch
        %866 = sbr.rel (%p864) target = $region274
      $region271: #{center_count_step.1} parent=266 // loop_body
        %v870 = vld [vmem:[%s868] sm:$0xff]
        %871 = vst [vmem:[%s869] sm:$0xff] %v870
        %v872 = vld [vmem:[%s868 + $0x8] sm:$0xff]
        %873 = vst [vmem:[%s869 + $0x8] sm:$0xff] %v872
        %v874 = vld [vmem:[%s868 + $0x10] sm:$0xff]
        %875 = vst [vmem:[%s869 + $0x10] sm:$0xff] %v874
      $region272: #{center_count_step.1} parent=266 // loop_footer
        %s867 = sadd.s32 1, %s863
      $region273: #{center_count_step.1} parent=266 // loop_footer_branch
        %862 = sbr.rel target = $region269
      $region274: #{center_count_step.1} parent=266 // loop_exit
        _
      %s877 = ssub.s32 32, 1
      loop: start=0, step=1, limit=1
      $region275: #{center_count_step.1} parent=266 // loop_pre_header
        _
      $region276: #{center_count_step.1} parent=266 // loop_header
        %s879 = sphi 0, %s883
        %p880 = scmp.ge.s32.totalorder %s879, 1
        %s884 = sphi %s860, %s860
        %s885 = sphi %s861, %s861
      $region277: #{center_count_step.1} parent=266 // loop_header_branch
        %882 = sbr.rel (%p880) target = $region281
      $region278: #{center_count_step.1} parent=266 // loop_body
        %v886 = vld [vmem:[%s884] sm:%s877]
        %887 = vst [vmem:[%s885] sm:%s877] %v886
      $region279: #{center_count_step.1} parent=266 // loop_footer
        %s883 = sadd.s32 1, %s879
      $region280: #{center_count_step.1} parent=266 // loop_footer_branch
        %878 = sbr.rel target = $region276
      $region281: #{center_count_step.1} parent=266 // loop_exit
        _
    $region267: #{center_count_step.1} parent=1 // pred_fallthru
      _
    // Predicated region
    $region282: #{center_count_step.1} parent=1 // pred_check
      _
    $region283: #{center_count_step.1} parent=1 // pred_check_branch
      %890 = sbr.rel (0) target = $region285
    $region284: #{center_count_step.1} parent=1 // pred_region
      %891 = vsyncadd %s247, 464
    $region285: #{center_count_step.1} parent=1 // pred_fallthru
      _
    %s892 = sshll.u32 %s218, 4
    %893 = dma.done %s247, %s892
    %s894 = scalar_lea.smem [#allocation9], %s774
    %895 = sst [smem:[%s894]] %s776
    %s896 = sld [smem:[#allocation4 + $0x6]]
    %s897 = sld [smem:[#allocation9 + %s896]]
    %s898 = sadd.f32 %s897, 1.0
    %v899 = vstv %s898
    %v900 = vrcp.pop %v899
    %v901 = vmul.f32 %v899, %v900
    %v902 = vsub.f32 1.0, %v901
    %v903 = vmul.f32 %v900, %v902
    %v904 = vadd.f32 %v900, %v903
    %vm905 = vweird.f32 %v899
    %vm906 = vweird.f32 %v900
    %vm907 = vmor %vm905, %vm906
    %v908 = vsel %vm907, %v900, %v904
    %v909 = vand.u32 2147483647, %v899
    %vm910 = vcmp.eq.f32.partialorder %v909, 8.507059e+37
    %v911 = vand.u32 %v899, 2147483648
    %v912 = vor.u32 1.1754944e-38, %v911
    %v913 = vsel %vm910, %v912, %v908
    %s914 = vtos %v913
    %s915 = smul.u32 %s896, 32
    %s916 = scalar_lea.vmem %s4, %s915
    // Predicated region
    $region286: #{center_count_step.1} parent=1 // pred_check
      _
    $region287: #{center_count_step.1} parent=1 // pred_check_branch
      %918 = sbr.rel (0) target = $region289
    $region288: #{center_count_step.1} parent=1 // pred_region
      %s919 = scalar_lea.vmem %s916, 24
      %s920 = scalar_lea.vmem [#allocation2], 24
      loop: start=0, step=1, limit=1
      $region290: #{center_count_step.1} parent=288 // loop_pre_header
        _
      $region291: #{center_count_step.1} parent=288 // loop_header
        %s922 = sphi 0, %s926
        %p923 = scmp.ge.s32.totalorder %s922, 1
        %s927 = sphi %s916, %s916
        %s928 = sphi [#allocation2], [#allocation2]
      $region292: #{center_count_step.1} parent=288 // loop_header_branch
        %925 = sbr.rel (%p923) target = $region296
      $region293: #{center_count_step.1} parent=288 // loop_body
        %v929 = vld [vmem:[%s927] sm:$0xff]
        %930 = vst [vmem:[%s928] sm:$0xff] %v929
        %v931 = vld [vmem:[%s927 + $0x8] sm:$0xff]
        %932 = vst [vmem:[%s928 + $0x8] sm:$0xff] %v931
        %v933 = vld [vmem:[%s927 + $0x10] sm:$0xff]
        %934 = vst [vmem:[%s928 + $0x10] sm:$0xff] %v933
      $region294: #{center_count_step.1} parent=288 // loop_footer
        %s926 = sadd.s32 1, %s922
      $region295: #{center_count_step.1} parent=288 // loop_footer_branch
        %921 = sbr.rel target = $region291
      $region296: #{center_count_step.1} parent=288 // loop_exit
        _
      %s936 = ssub.s32 32, 1
      loop: start=0, step=1, limit=1
      $region297: #{center_count_step.1} parent=288 // loop_pre_header
        _
      $region298: #{center_count_step.1} parent=288 // loop_header
        %s938 = sphi 0, %s942
        %p939 = scmp.ge.s32.totalorder %s938, 1
        %s943 = sphi %s919, %s919
        %s944 = sphi %s920, %s920
      $region299: #{center_count_step.1} parent=288 // loop_header_branch
        %941 = sbr.rel (%p939) target = $region303
      $region300: #{center_count_step.1} parent=288 // loop_body
        %v945 = vld [vmem:[%s943] sm:%s936]
        %946 = vst [vmem:[%s944] sm:%s936] %v945
      $region301: #{center_count_step.1} parent=288 // loop_footer
        %s942 = sadd.s32 1, %s938
      $region302: #{center_count_step.1} parent=288 // loop_footer_branch
        %937 = sbr.rel target = $region298
      $region303: #{center_count_step.1} parent=288 // loop_exit
        _
    $region289: #{center_count_step.1} parent=1 // pred_fallthru
      _
    // Predicated region
    $region304: #{center_count_step.1} parent=1 // pred_check
      _
    $region305: #{center_count_step.1} parent=1 // pred_check_branch
      %949 = sbr.rel (0) target = $region307
    $region306: #{center_count_step.1} parent=1 // pred_region
      %950 = vsyncadd [#allocation3], 464
    $region307: #{center_count_step.1} parent=1 // pred_fallthru
      _
    %s951 = sshll.u32 %s218, 4
    %952 = dma.done [#allocation3], %s951
    %v953 = vld [vmem:[#allocation2] sm:$0xff]
    %v954 = vld [vmem:[#allocation2 + $0x8] sm:$0xff]
    %v955 = vld [vmem:[#allocation2 + $0x10] sm:$0xff]
    %v956 = vld [vmem:[#allocation2 + $0x18] sm:$0x1f]
    %v957 = vstv %s897
    %v958 = vmul.f32 %v957, %v953
    %v959 = vmul.f32 %v957, %v954
    %v960 = vmul.f32 %v957, %v955
    %v961 = vmul.f32 %v957, %v956
    %s962 = scalar_lea.vmem %s1, 192
    %v963 = vld [vmem:[%s962] sm:$0xff]
    %v964 = vld [vmem:[%s962 + $0x8] sm:$0xff]
    %v965 = vld [vmem:[%s962 + $0x10] sm:$0xff]
    %v966 = vld [vmem:[%s962 + $0x18] sm:$0x1f]
    %v967 = vadd.f32 %v958, %v963
    %v968 = vadd.f32 %v959, %v964
    %v969 = vadd.f32 %v960, %v965
    %v970 = vadd.f32 %v961, %v966
    %v971 = vstv %s914
    %v972 = vmul.f32 %v967, %v971
    %v973 = vmul.f32 %v968, %v971
    %v974 = vmul.f32 %v969, %v971
    %v975 = vmul.f32 %v970, %v971
    %976 = vst [vmem:[#allocation2] sm:$0xff] %v972
    %977 = vst [vmem:[#allocation2 + $0x8] sm:$0xff] %v973
    %978 = vst [vmem:[#allocation2 + $0x10] sm:$0xff] %v974
    %979 = vst [vmem:[#allocation2 + $0x18] sm:$0x1f] %v975
    // Predicated region
    $region308: #{center_count_step.1} parent=1 // pred_check
      _
    $region309: #{center_count_step.1} parent=1 // pred_check_branch
      %981 = sbr.rel (0) target = $region311
    $region310: #{center_count_step.1} parent=1 // pred_region
      %s982 = scalar_lea.vmem [#allocation2], 24
      %s983 = scalar_lea.vmem %s916, 24
      loop: start=0, step=1, limit=1
      $region312: #{center_count_step.1} parent=310 // loop_pre_header
        _
      $region313: #{center_count_step.1} parent=310 // loop_header
        %s985 = sphi 0, %s989
        %p986 = scmp.ge.s32.totalorder %s985, 1
        %s990 = sphi [#allocation2], [#allocation2]
        %s991 = sphi %s916, %s916
      $region314: #{center_count_step.1} parent=310 // loop_header_branch
        %988 = sbr.rel (%p986) target = $region318
      $region315: #{center_count_step.1} parent=310 // loop_body
        %v992 = vld [vmem:[%s990] sm:$0xff]
        %993 = vst [vmem:[%s991] sm:$0xff] %v992
        %v994 = vld [vmem:[%s990 + $0x8] sm:$0xff]
        %995 = vst [vmem:[%s991 + $0x8] sm:$0xff] %v994
        %v996 = vld [vmem:[%s990 + $0x10] sm:$0xff]
        %997 = vst [vmem:[%s991 + $0x10] sm:$0xff] %v996
      $region316: #{center_count_step.1} parent=310 // loop_footer
        %s989 = sadd.s32 1, %s985
      $region317: #{center_count_step.1} parent=310 // loop_footer_branch
        %984 = sbr.rel target = $region313
      $region318: #{center_count_step.1} parent=310 // loop_exit
        _
      %s999 = ssub.s32 32, 1
      loop: start=0, step=1, limit=1
      $region319: #{center_count_step.1} parent=310 // loop_pre_header
        _
      $region320: #{center_count_step.1} parent=310 // loop_header
        %s1001 = sphi 0, %s1005
        %p1002 = scmp.ge.s32.totalorder %s1001, 1
        %s1006 = sphi %s982, %s982
        %s1007 = sphi %s983, %s983
      $region321: #{center_count_step.1} parent=310 // loop_header_branch
        %1004 = sbr.rel (%p1002) target = $region325
      $region322: #{center_count_step.1} parent=310 // loop_body
        %v1008 = vld [vmem:[%s1006] sm:%s999]
        %1009 = vst [vmem:[%s1007] sm:%s999] %v1008
      $region323: #{center_count_step.1} parent=310 // loop_footer
        %s1005 = sadd.s32 1, %s1001
      $region324: #{center_count_step.1} parent=310 // loop_footer_branch
        %1000 = sbr.rel target = $region320
      $region325: #{center_count_step.1} parent=310 // loop_exit
        _
    $region311: #{center_count_step.1} parent=1 // pred_fallthru
      _
    // Predicated region
    $region326: #{center_count_step.1} parent=1 // pred_check
      _
    $region327: #{center_count_step.1} parent=1 // pred_check_branch
      %1012 = sbr.rel (0) target = $region329
    $region328: #{center_count_step.1} parent=1 // pred_region
      %1013 = vsyncadd %s247, 464
    $region329: #{center_count_step.1} parent=1 // pred_fallthru
      _
    %s1014 = sshll.u32 %s218, 4
    %1015 = dma.done %s247, %s1014
    %s1016 = scalar_lea.smem [#allocation9], %s896
    %1017 = sst [smem:[%s1016]] %s898
    %s1018 = sld [smem:[#allocation4 + $0x7]]
    %s1019 = sld [smem:[#allocation9 + %s1018]]
    %s1020 = sadd.f32 %s1019, 1.0
    %v1021 = vstv %s1020
    %v1022 = vrcp.pop %v1021
    %v1023 = vmul.f32 %v1021, %v1022
    %v1024 = vsub.f32 1.0, %v1023
    %v1025 = vmul.f32 %v1022, %v1024
    %v1026 = vadd.f32 %v1022, %v1025
    %vm1027 = vweird.f32 %v1021
    %vm1028 = vweird.f32 %v1022
    %vm1029 = vmor %vm1027, %vm1028
    %v1030 = vsel %vm1029, %v1022, %v1026
    %v1031 = vand.u32 2147483647, %v1021
    %vm1032 = vcmp.eq.f32.partialorder %v1031, 8.507059e+37
    %v1033 = vand.u32 %v1021, 2147483648
    %v1034 = vor.u32 1.1754944e-38, %v1033
    %v1035 = vsel %vm1032, %v1034, %v1030
    %s1036 = vtos %v1035
    %s1037 = smul.u32 %s1018, 32
    %s1038 = scalar_lea.vmem %s4, %s1037
    // Predicated region
    $region330: #{center_count_step.1} parent=1 // pred_check
      _
    $region331: #{center_count_step.1} parent=1 // pred_check_branch
      %1040 = sbr.rel (0) target = $region333
    $region332: #{center_count_step.1} parent=1 // pred_region
      %s1041 = scalar_lea.vmem %s1038, 24
      %s1042 = scalar_lea.vmem [#allocation2], 24
      loop: start=0, step=1, limit=1
      $region334: #{center_count_step.1} parent=332 // loop_pre_header
        _
      $region335: #{center_count_step.1} parent=332 // loop_header
        %s1044 = sphi 0, %s1048
        %p1045 = scmp.ge.s32.totalorder %s1044, 1
        %s1049 = sphi %s1038, %s1038
        %s1050 = sphi [#allocation2], [#allocation2]
      $region336: #{center_count_step.1} parent=332 // loop_header_branch
        %1047 = sbr.rel (%p1045) target = $region340
      $region337: #{center_count_step.1} parent=332 // loop_body
        %v1051 = vld [vmem:[%s1049] sm:$0xff]
        %1052 = vst [vmem:[%s1050] sm:$0xff] %v1051
        %v1053 = vld [vmem:[%s1049 + $0x8] sm:$0xff]
        %1054 = vst [vmem:[%s1050 + $0x8] sm:$0xff] %v1053
        %v1055 = vld [vmem:[%s1049 + $0x10] sm:$0xff]
        %1056 = vst [vmem:[%s1050 + $0x10] sm:$0xff] %v1055
      $region338: #{center_count_step.1} parent=332 // loop_footer
        %s1048 = sadd.s32 1, %s1044
      $region339: #{center_count_step.1} parent=332 // loop_footer_branch
        %1043 = sbr.rel target = $region335
      $region340: #{center_count_step.1} parent=332 // loop_exit
        _
      %s1058 = ssub.s32 32, 1
      loop: start=0, step=1, limit=1
      $region341: #{center_count_step.1} parent=332 // loop_pre_header
        _
      $region342: #{center_count_step.1} parent=332 // loop_header
        %s1060 = sphi 0, %s1064
        %p1061 = scmp.ge.s32.totalorder %s1060, 1
        %s1065 = sphi %s1041, %s1041
        %s1066 = sphi %s1042, %s1042
      $region343: #{center_count_step.1} parent=332 // loop_header_branch
        %1063 = sbr.rel (%p1061) target = $region347
      $region344: #{center_count_step.1} parent=332 // loop_body
        %v1067 = vld [vmem:[%s1065] sm:%s1058]
        %1068 = vst [vmem:[%s1066] sm:%s1058] %v1067
      $region345: #{center_count_step.1} parent=332 // loop_footer
        %s1064 = sadd.s32 1, %s1060
      $region346: #{center_count_step.1} parent=332 // loop_footer_branch
        %1059 = sbr.rel target = $region342
      $region347: #{center_count_step.1} parent=332 // loop_exit
        _
    $region333: #{center_count_step.1} parent=1 // pred_fallthru
      _
    // Predicated region
    $region348: #{center_count_step.1} parent=1 // pred_check
      _
    $region349: #{center_count_step.1} parent=1 // pred_check_branch
      %1071 = sbr.rel (0) target = $region351
    $region350: #{center_count_step.1} parent=1 // pred_region
      %1072 = vsyncadd [#allocation3], 464
    $region351: #{center_count_step.1} parent=1 // pred_fallthru
      _
    %s1073 = sshll.u32 %s218, 4
    %1074 = dma.done [#allocation3], %s1073
    %v1075 = vld [vmem:[#allocation2] sm:$0xff]
    %v1076 = vld [vmem:[#allocation2 + $0x8] sm:$0xff]
    %v1077 = vld [vmem:[#allocation2 + $0x10] sm:$0xff]
    %v1078 = vld [vmem:[#allocation2 + $0x18] sm:$0x1f]
    %v1079 = vstv %s1019
    %v1080 = vmul.f32 %v1079, %v1075
    %v1081 = vmul.f32 %v1079, %v1076
    %v1082 = vmul.f32 %v1079, %v1077
    %v1083 = vmul.f32 %v1079, %v1078
    %s1084 = scalar_lea.vmem %s1, 224
    %v1085 = vld [vmem:[%s1084] sm:$0xff]
    %v1086 = vld [vmem:[%s1084 + $0x8] sm:$0xff]
    %v1087 = vld [vmem:[%s1084 + $0x10] sm:$0xff]
    %v1088 = vld [vmem:[%s1084 + $0x18] sm:$0x1f]
    %v1089 = vadd.f32 %v1080, %v1085
    %v1090 = vadd.f32 %v1081, %v1086
    %v1091 = vadd.f32 %v1082, %v1087
    %v1092 = vadd.f32 %v1083, %v1088
    %v1093 = vstv %s1036
    %v1094 = vmul.f32 %v1089, %v1093
    %v1095 = vmul.f32 %v1090, %v1093
    %v1096 = vmul.f32 %v1091, %v1093
    %v1097 = vmul.f32 %v1092, %v1093
    %1098 = vst [vmem:[#allocation2] sm:$0xff] %v1094
    %1099 = vst [vmem:[#allocation2 + $0x8] sm:$0xff] %v1095
    %1100 = vst [vmem:[#allocation2 + $0x10] sm:$0xff] %v1096
    %1101 = vst [vmem:[#allocation2 + $0x18] sm:$0x1f] %v1097
    // Predicated region
    $region352: #{center_count_step.1} parent=1 // pred_check
      _
    $region353: #{center_count_step.1} parent=1 // pred_check_branch
      %1103 = sbr.rel (0) target = $region355
    $region354: #{center_count_step.1} parent=1 // pred_region
      %s1104 = scalar_lea.vmem [#allocation2], 24
      %s1105 = scalar_lea.vmem %s1038, 24
      loop: start=0, step=1, limit=1
      $region356: #{center_count_step.1} parent=354 // loop_pre_header
        _
      $region357: #{center_count_step.1} parent=354 // loop_header
        %s1107 = sphi 0, %s1111
        %p1108 = scmp.ge.s32.totalorder %s1107, 1
        %s1112 = sphi [#allocation2], [#allocation2]
        %s1113 = sphi %s1038, %s1038
      $region358: #{center_count_step.1} parent=354 // loop_header_branch
        %1110 = sbr.rel (%p1108) target = $region362
      $region359: #{center_count_step.1} parent=354 // loop_body
        %v1114 = vld [vmem:[%s1112] sm:$0xff]
        %1115 = vst [vmem:[%s1113] sm:$0xff] %v1114
        %v1116 = vld [vmem:[%s1112 + $0x8] sm:$0xff]
        %1117 = vst [vmem:[%s1113 + $0x8] sm:$0xff] %v1116
        %v1118 = vld [vmem:[%s1112 + $0x10] sm:$0xff]
        %1119 = vst [vmem:[%s1113 + $0x10] sm:$0xff] %v1118
      $region360: #{center_count_step.1} parent=354 // loop_footer
        %s1111 = sadd.s32 1, %s1107
      $region361: #{center_count_step.1} parent=354 // loop_footer_branch
        %1106 = sbr.rel target = $region357
      $region362: #{center_count_step.1} parent=354 // loop_exit
        _
      %s1121 = ssub.s32 32, 1
      loop: start=0, step=1, limit=1
      $region363: #{center_count_step.1} parent=354 // loop_pre_header
        _
      $region364: #{center_count_step.1} parent=354 // loop_header
        %s1123 = sphi 0, %s1127
        %p1124 = scmp.ge.s32.totalorder %s1123, 1
        %s1128 = sphi %s1104, %s1104
        %s1129 = sphi %s1105, %s1105
      $region365: #{center_count_step.1} parent=354 // loop_header_branch
        %1126 = sbr.rel (%p1124) target = $region369
      $region366: #{center_count_step.1} parent=354 // loop_body
        %v1130 = vld [vmem:[%s1128] sm:%s1121]
        %1131 = vst [vmem:[%s1129] sm:%s1121] %v1130
      $region367: #{center_count_step.1} parent=354 // loop_footer
        %s1127 = sadd.s32 1, %s1123
      $region368: #{center_count_step.1} parent=354 // loop_footer_branch
        %1122 = sbr.rel target = $region364
      $region369: #{center_count_step.1} parent=354 // loop_exit
        _
    $region355: #{center_count_step.1} parent=1 // pred_fallthru
      _
    // Predicated region
    $region370: #{center_count_step.1} parent=1 // pred_check
      _
    $region371: #{center_count_step.1} parent=1 // pred_check_branch
      %1134 = sbr.rel (0) target = $region373
    $region372: #{center_count_step.1} parent=1 // pred_region
      %1135 = vsyncadd %s247, 464
    $region373: #{center_count_step.1} parent=1 // pred_fallthru
      _
    %s1136 = sshll.u32 %s218, 4
    %1137 = dma.done %s247, %s1136
    %s1138 = scalar_lea.smem [#allocation9], %s1018
    %1139 = sst [smem:[%s1138]] %s1020
    // Predicated region
    $region374: #{center_count_step.1} parent=1 // pred_check
      _
    $region375: #{center_count_step.1} parent=1 // pred_check_branch
      %1141 = sbr.rel (0) target = $region377
    $region376: #{center_count_step.1} parent=1 // pred_region
      %1143 = vsyncadd [#allocation5], 0
      %s1145 = sshll.u32 %s5, 4
      %s1146 = int_to_ptr.hbm [resolvable:$true] %s1145
      %1148 = dma.smem_to_hbm [#allocation9], 16, %s1146, [#allocation5]
    $region377: #{center_count_step.1} parent=1 // pred_fallthru
      _
    // Predicated region
    $region378: #{center_count_step.1} parent=1 // pred_check
      _
    $region379: #{center_count_step.1} parent=1 // pred_check_branch
      %1150 = sbr.rel (0) target = $region381
    $region380: #{center_count_step.1} parent=1 // pred_region
      %1152 = dma.done [#allocation5], 16
    $region381: #{center_count_step.1} parent=1 // pred_fallthru
      _
    %1153 = sfence
    %1154 = vsyncpa [#allocation5], 1
    %1155 = vsyncpa [#allocation6], 1
    %1156 = vsyncpa [#allocation8], 1
  %1157 = vsyncmov [#allocation3]
  %s1158 = vpop.sfrf %1157
  %p1159 = scmp.eq.s32.totalorder %s1158, 0
  %p1160 = pneg %p1159
  %1162 = shalt.err (%p1160)
  %s1163 = scalar_lea.sflag [#allocation3], 1
  %1164 = vsyncmov %s1163
  %s1165 = vpop.sfrf %1164
  %p1166 = scmp.eq.s32.totalorder %s1165, 0
  %p1167 = pneg %p1166
  %1169 = shalt.err (%p1167)

</llo_original>
